<compile_context>
chip_gen: v6e
topology: v6e:2x2x1
jax: 0.10.0
libtpu: 0.0.40
codegen_flags: <defaults>
</compile_context>

<pallas_src>
import functools

import jax
import jax.numpy as jnp
import numpy as np
from jax.experimental import pallas as pl
from jax.experimental.pallas import tpu as pltpu


def _topk_routing_kernel(adj_ref, w_ref, idx_ref, *, topk):
    """For one tile of rows: top-k along the last dim + softmax of the k logits."""
    x = adj_ref[...].astype(jnp.float32)                    # (tm, L)
    tm, L = x.shape
    col = jax.lax.broadcasted_iota(jnp.int32, (tm, L), 1)   # column ids
    mask_val = jnp.float32(jnp.finfo(jnp.float32).min)

    work = x
    vals, idxs = [], []
    for _ in range(topk):                                   # static unroll, topk is tiny
        m = jnp.max(work, axis=-1, keepdims=True)           # (tm, 1) current max
        hit = work == m
        # smallest column index among the maxima (torch/jax tie-break order)
        sel = jnp.min(jnp.where(hit, col, L), axis=-1, keepdims=True)
        vals.append(m)
        idxs.append(sel)
        work = jnp.where(col == sel, mask_val, work)        # knock out the winner

    v = jnp.concatenate(vals, axis=-1)                      # (tm, topk), descending
    i = jnp.concatenate(idxs, axis=-1)                      # (tm, topk)

    # softmax over the k selected logits; vals[0] is the row max (EUP exp).
    e = jnp.exp(v - vals[0])
    denom = jnp.sum(e, axis=-1, keepdims=True)
    w_ref[...] = (e / denom).astype(w_ref.dtype)
    idx_ref[...] = i.astype(idx_ref.dtype)


def topk_routing(adj, topk=4, *, tm=512):
    """Pallas implementation of TopkRouting(adj) -> (r_weight, topk_index).

    adj : (..., L) float array (typically (n, p^2, p^2) routing logits)
    returns (r_weight f32, topk_index int32), both shaped (..., topk)
    """
    *lead, L = adj.shape
    M = int(np.prod(lead)) if lead else 1
    adj2 = adj.reshape(M, L)

    # Row tile: as large as possible (perf review), multiple of 8 when tiling.
    tm = int(min(tm, M))
    if tm < M:
        tm = max(8, (tm // 8) * 8)
    grid = (pl.cdiv(M, tm),)

    # VMEM budget: double-buffered input tile + outputs + working copies.
    in_tile = tm * L * adj2.dtype.itemsize
    out_tile = tm * topk * (4 + 4)
    vmem_limit = int(min(max(6 * in_tile + 4 * out_tile + (1 << 20), 32 << 20), 96 << 20))

    cost = pl.CostEstimate(
        flops=(3 * topk + 2) * M * L,                 # k max/cmp/select passes + softmax
        transcendentals=M * topk,                     # exp
        bytes_accessed=M * L * adj2.dtype.itemsize + M * topk * 8,
    )

    w, idx = pl.pallas_call(
        functools.partial(_topk_routing_kernel, topk=topk),
        out_shape=(
            jax.ShapeDtypeStruct((M, topk), jnp.float32),
            jax.ShapeDtypeStruct((M, topk), jnp.int32),
        ),
        grid_spec=pltpu.PrefetchScalarGridSpec(
            num_scalar_prefetch=0,
            grid=grid,
            in_specs=[pl.BlockSpec((tm, L), lambda i: (i, 0))],
            out_specs=(
                pl.BlockSpec((tm, topk), lambda i: (i, 0)),
                pl.BlockSpec((tm, topk), lambda i: (i, 0)),
            ),
        ),
        compiler_params=pltpu.CompilerParams(
            dimension_semantics=("parallel",),
            vmem_limit_bytes=vmem_limit,
        ),
        cost_estimate=cost,
    )(adj2)

    return w.reshape(*lead, topk), idx.reshape(*lead, topk)


def _reference(adj, topk):
    """Pure-JAX reference matching torch.topk + softmax."""
    v, i = jax.lax.top_k(adj, topk)
    return jax.nn.softmax(v, axis=-1), i


if __name__ == "__main__":
    # Small shapes consistent with the module: n=2 windows, p^2=64 tokens,
    # adjacency/attention logits adj of shape (n, p^2, p^2), topk=4.
    n, p2, topk = 2, 64, 4
    key = jax.random.PRNGKey(0)
    adj = jax.random.normal(key, (n, p2, p2), dtype=jnp.float32)

    w, idx = topk_routing(adj, topk=topk)
    w = jax.block_until_ready(w)
    idx = jax.block_until_ready(idx)

    w_ref, i_ref = _reference(adj, topk)

    assert w.shape == (n, p2, topk) and idx.shape == (n, p2, topk)
    assert jnp.allclose(w, w_ref, atol=1e-5, rtol=1e-5), "routing weights mismatch"
    assert jnp.array_equal(idx, i_ref), "topk indices mismatch"

    print("KERNEL_OK")
</pallas_src>

<mosaic_0001>
module attributes {stable_mosaic.version = 11 : i64} {
  func.func @_topk_routing_kernel(%arg0: i32, %arg1: memref<128x64xf32, #tpu.memory_space<vmem>>, %arg2: memref<128x4xf32, #tpu.memory_space<vmem>>, %arg3: memref<128x4xi32, #tpu.memory_space<vmem>>) attributes {dimension_semantics = [#tpu.dimension_semantics<parallel>], iteration_bounds = array<i64: 1>, scalar_prefetch = 0 : i64, scratch_operands = 0 : i64, tpu.core_type = #tpu.core_type<tc>, window_params = [{transform_indices = @transform_0, window_bounds = array<i64: 128, 64>}, {transform_indices = @transform_1, window_bounds = array<i64: 128, 4>}, {transform_indices = @transform_2, window_bounds = array<i64: 128, 4>}]} {
    %c0 = arith.constant 0 : index
    %c0_0 = arith.constant 0 : index
    %0 = vector.load %arg1[%c0, %c0_0] : memref<128x64xf32, #tpu.memory_space<vmem>>, vector<128x64xf32>
    %1 = tpu.iota {dimensions = array<i32: 1>} : vector<128x64xi32>
    %cst = arith.constant dense<0xFF800000> : vector<128xf32>
    %2 = vector.multi_reduction <maximumf>, %0, %cst [1] : vector<128x64xf32> to vector<128xf32>
    %3 = vector.shape_cast %2 : vector<128xf32> to vector<128x1xf32>
    %4 = vector.broadcast %3 : vector<128x1xf32> to vector<128x64xf32>
    %5 = arith.cmpf oeq, %0, %4 : vector<128x64xf32>
    %c64_i32 = arith.constant 64 : i32
    %6 = vector.broadcast %c64_i32 : i32 to vector<128x64xi32>
    %7 = arith.select %5, %1, %6 : vector<128x64xi1>, vector<128x64xi32>
    %cst_1 = arith.constant dense<2147483647> : vector<128xi32>
    %8 = vector.multi_reduction <minsi>, %7, %cst_1 [1] : vector<128x64xi32> to vector<128xi32>
    %9 = vector.shape_cast %8 : vector<128xi32> to vector<128x1xi32>
    %10 = vector.broadcast %9 : vector<128x1xi32> to vector<128x64xi32>
    %11 = arith.cmpi eq, %1, %10 : vector<128x64xi32>
    %cst_2 = arith.constant -3.40282347E+38 : f32
    %12 = vector.broadcast %cst_2 : f32 to vector<128x64xf32>
    %13 = arith.select %11, %12, %0 : vector<128x64xi1>, vector<128x64xf32>
    %cst_3 = arith.constant dense<0xFF800000> : vector<128xf32>
    %14 = vector.multi_reduction <maximumf>, %13, %cst_3 [1] : vector<128x64xf32> to vector<128xf32>
    %15 = vector.shape_cast %14 : vector<128xf32> to vector<128x1xf32>
    %16 = vector.broadcast %15 : vector<128x1xf32> to vector<128x64xf32>
    %17 = arith.cmpf oeq, %13, %16 : vector<128x64xf32>
    %c64_i32_4 = arith.constant 64 : i32
    %18 = vector.broadcast %c64_i32_4 : i32 to vector<128x64xi32>
    %19 = arith.select %17, %1, %18 : vector<128x64xi1>, vector<128x64xi32>
    %cst_5 = arith.constant dense<2147483647> : vector<128xi32>
    %20 = vector.multi_reduction <minsi>, %19, %cst_5 [1] : vector<128x64xi32> to vector<128xi32>
    %21 = vector.shape_cast %20 : vector<128xi32> to vector<128x1xi32>
    %22 = vector.broadcast %21 : vector<128x1xi32> to vector<128x64xi32>
    %23 = arith.cmpi eq, %1, %22 : vector<128x64xi32>
    %cst_6 = arith.constant -3.40282347E+38 : f32
    %24 = vector.broadcast %cst_6 : f32 to vector<128x64xf32>
    %25 = arith.select %23, %24, %13 : vector<128x64xi1>, vector<128x64xf32>
    %cst_7 = arith.constant dense<0xFF800000> : vector<128xf32>
    %26 = vector.multi_reduction <maximumf>, %25, %cst_7 [1] : vector<128x64xf32> to vector<128xf32>
    %27 = vector.shape_cast %26 : vector<128xf32> to vector<128x1xf32>
    %28 = vector.broadcast %27 : vector<128x1xf32> to vector<128x64xf32>
    %29 = arith.cmpf oeq, %25, %28 : vector<128x64xf32>
    %c64_i32_8 = arith.constant 64 : i32
    %30 = vector.broadcast %c64_i32_8 : i32 to vector<128x64xi32>
    %31 = arith.select %29, %1, %30 : vector<128x64xi1>, vector<128x64xi32>
    %cst_9 = arith.constant dense<2147483647> : vector<128xi32>
    %32 = vector.multi_reduction <minsi>, %31, %cst_9 [1] : vector<128x64xi32> to vector<128xi32>
    %33 = vector.shape_cast %32 : vector<128xi32> to vector<128x1xi32>
    %34 = vector.broadcast %33 : vector<128x1xi32> to vector<128x64xi32>
    %35 = arith.cmpi eq, %1, %34 : vector<128x64xi32>
    %cst_10 = arith.constant -3.40282347E+38 : f32
    %36 = vector.broadcast %cst_10 : f32 to vector<128x64xf32>
    %37 = arith.select %35, %36, %25 : vector<128x64xi1>, vector<128x64xf32>
    %cst_11 = arith.constant dense<0xFF800000> : vector<128xf32>
    %38 = vector.multi_reduction <maximumf>, %37, %cst_11 [1] : vector<128x64xf32> to vector<128xf32>
    %39 = vector.shape_cast %38 : vector<128xf32> to vector<128x1xf32>
    %40 = vector.broadcast %39 : vector<128x1xf32> to vector<128x64xf32>
    %41 = arith.cmpf oeq, %37, %40 : vector<128x64xf32>
    %c64_i32_12 = arith.constant 64 : i32
    %42 = vector.broadcast %c64_i32_12 : i32 to vector<128x64xi32>
    %43 = arith.select %41, %1, %42 : vector<128x64xi1>, vector<128x64xi32>
    %cst_13 = arith.constant dense<2147483647> : vector<128xi32>
    %44 = vector.multi_reduction <minsi>, %43, %cst_13 [1] : vector<128x64xi32> to vector<128xi32>
    %45 = vector.shape_cast %44 : vector<128xi32> to vector<128x1xi32>
    %46 = tpu.concatenate %3, %15, %27, %39 in 1 : vector<128x1xf32>, vector<128x1xf32>, vector<128x1xf32>, vector<128x1xf32> -> vector<128x4xf32>
    %47 = tpu.concatenate %9, %21, %33, %45 in 1 : vector<128x1xi32>, vector<128x1xi32>, vector<128x1xi32>, vector<128x1xi32> -> vector<128x4xi32>
    %48 = vector.broadcast %3 : vector<128x1xf32> to vector<128x4xf32>
    %49 = arith.subf %46, %48 : vector<128x4xf32>
    %50 = math.exp %49 : vector<128x4xf32>
    %cst_14 = arith.constant dense<0.000000e+00> : vector<128xf32>
    %51 = vector.multi_reduction <add>, %50, %cst_14 [1] : vector<128x4xf32> to vector<128xf32>
    %52 = vector.shape_cast %51 : vector<128xf32> to vector<128x1xf32>
    %53 = vector.broadcast %52 : vector<128x1xf32> to vector<128x4xf32>
    %54 = arith.divf %50, %53 : vector<128x4xf32>
    %c0_15 = arith.constant 0 : index
    %c0_16 = arith.constant 0 : index
    %55 = vector.load %arg2[%c0_15, %c0_16] : memref<128x4xf32, #tpu.memory_space<vmem>>, vector<128x4xf32>
    tpu.vector_store %arg2[%c0_15, %c0_16], %54 {strides = array<i32>} : memref<128x4xf32, #tpu.memory_space<vmem>>, vector<128x4xf32>,
    %c0_17 = arith.constant 0 : index
    %c0_18 = arith.constant 0 : index
    %56 = vector.load %arg3[%c0_17, %c0_18] : memref<128x4xi32, #tpu.memory_space<vmem>>, vector<128x4xi32>
    tpu.vector_store %arg3[%c0_17, %c0_18], %47 {strides = array<i32>} : memref<128x4xi32, #tpu.memory_space<vmem>>, vector<128x4xi32>,
    return
  }
  func.func @transform_0(%arg0: i32) -> (i32, i32) {
    %c0_i32 = arith.constant 0 : i32
    %c0_i32_0 = arith.constant 0 : i32
    return %arg0, %c0_i32 : i32, i32
  }
  func.func @transform_1(%arg0: i32) -> (i32, i32) {
    %c0_i32 = arith.constant 0 : i32
    %c0_i32_0 = arith.constant 0 : i32
    return %arg0, %c0_i32 : i32, i32
  }
  func.func @transform_2(%arg0: i32) -> (i32, i32) {
    %c0_i32 = arith.constant 0 : i32
    %c0_i32_0 = arith.constant 0 : i32
    return %arg0, %c0_i32 : i32, i32
  }
}

</mosaic_0001>

<llo_original>
// kernel: tpu_custom_call.1
$region0: #{tpu_custom_call.1}
  #allocation0 [shape = 'u32[]', space=smem, size = 0x4, offset = 0x4, fixed_abs, tag = 'smem constant byte address 0x4 - core index']
  #allocation1 [shape = 'u32[144,128]{1,0:T(1,128)}', space=vmem, size = 0x12000, scoped, tag = 'internal scratch']
  %s0 = inlined_call_operand.vmem [shape: f32[128,64], index: 0, kind: input, shape index: {}]
  %s1 = inlined_call_operand.vmem [shape: f32[128,4], index: 1, kind: output, shape index: {0}]
  %s2 = inlined_call_operand.vmem [shape: s32[128,4], index: 2, kind: output, shape index: {1}]
  %3 = xla_tuple %s1, %s2
  %s4 = sld [smem:[#allocation0]]
  $region22: #{tpu_custom_call.1} parent=0
    _
  %s6 = ssub.s32 1, %s4
  %s7 = scalar_select 0, %s6, %s4
  // Predicated region
  $region2: #{tpu_custom_call.1} parent=0 // pred_check
    _
  $region3: #{tpu_custom_call.1} parent=0 // pred_check_branch
    %9 = sbr.rel (0) target = $region5
  $region4: #{tpu_custom_call.1} parent=0 // pred_region
    _
  $region5: #{tpu_custom_call.1} parent=0 // pred_fallthru
    _
  %v10 = vld [vmem:[%s0] sm:$0xff]
  %v11 = vld [vmem:[%s0 + $0x8] sm:$0xff]
  %v12 = vld [vmem:[%s0 + $0x10] sm:$0xff]
  %v13 = vld [vmem:[%s0 + $0x18] sm:$0xff]
  %v14 = vld [vmem:[%s0 + $0x20] sm:$0xff]
  %v15 = vld [vmem:[%s0 + $0x28] sm:$0xff]
  %v16 = vld [vmem:[%s0 + $0x30] sm:$0xff]
  %v17 = vld [vmem:[%s0 + $0x38] sm:$0xff]
  %v18 = vld [vmem:[%s0 + $0x40] sm:$0xff]
  %v19 = vld [vmem:[%s0 + $0x48] sm:$0xff]
  %v20 = vld [vmem:[%s0 + $0x50] sm:$0xff]
  %v21 = vld [vmem:[%s0 + $0x58] sm:$0xff]
  %v22 = vld [vmem:[%s0 + $0x60] sm:$0xff]
  %v23 = vld [vmem:[%s0 + $0x68] sm:$0xff]
  %v24 = vld [vmem:[%s0 + $0x70] sm:$0xff]
  %v25 = vld [vmem:[%s0 + $0x78] sm:$0xff]
  %v26 = vlaneseq
  %v27 = vand.u32 %v26, 127
  %vm28 = vcmask 523264
  %v29 = vsel %vm28, %v10, -inf
  %30 = vmax.xlane.f32.xlu0 %v29
  %v31 = vpop.xlane.xlu0 %30
  %v32 = vsel %vm28, %v11, -inf
  %33 = vmax.xlane.f32.xlu0 %v32
  %v34 = vpop.xlane.xlu0 %33
  %v35 = vsel %vm28, %v12, -inf
  %36 = vmax.xlane.f32.xlu0 %v35
  %v37 = vpop.xlane.xlu0 %36
  %v38 = vsel %vm28, %v13, -inf
  %39 = vmax.xlane.f32.xlu0 %v38
  %v40 = vpop.xlane.xlu0 %39
  %v41 = vsel %vm28, %v14, -inf
  %42 = vmax.xlane.f32.xlu0 %v41
  %v43 = vpop.xlane.xlu0 %42
  %v44 = vsel %vm28, %v15, -inf
  %45 = vmax.xlane.f32.xlu0 %v44
  %v46 = vpop.xlane.xlu0 %45
  %v47 = vsel %vm28, %v16, -inf
  %48 = vmax.xlane.f32.xlu0 %v47
  %v49 = vpop.xlane.xlu0 %48
  %v50 = vsel %vm28, %v17, -inf
  %51 = vmax.xlane.f32.xlu0 %v50
  %v52 = vpop.xlane.xlu0 %51
  %v53 = vsel %vm28, %v18, -inf
  %54 = vmax.xlane.f32.xlu0 %v53
  %v55 = vpop.xlane.xlu0 %54
  %v56 = vsel %vm28, %v19, -inf
  %57 = vmax.xlane.f32.xlu0 %v56
  %v58 = vpop.xlane.xlu0 %57
  %v59 = vsel %vm28, %v20, -inf
  %60 = vmax.xlane.f32.xlu0 %v59
  %v61 = vpop.xlane.xlu0 %60
  %v62 = vsel %vm28, %v21, -inf
  %63 = vmax.xlane.f32.xlu0 %v62
  %v64 = vpop.xlane.xlu0 %63
  %v65 = vsel %vm28, %v22, -inf
  %66 = vmax.xlane.f32.xlu0 %v65
  %v67 = vpop.xlane.xlu0 %66
  %v68 = vsel %vm28, %v23, -inf
  %69 = vmax.xlane.f32.xlu0 %v68
  %v70 = vpop.xlane.xlu0 %69
  %v71 = vsel %vm28, %v24, -inf
  %72 = vmax.xlane.f32.xlu0 %v71
  %v73 = vpop.xlane.xlu0 %72
  %v74 = vsel %vm28, %v25, -inf
  %75 = vmax.xlane.f32.xlu0 %v74
  %v76 = vpop.xlane.xlu0 %75
  %vm77 = vcmp.eq.f32.partialorder %v10, %v31
  %vm78 = vcmp.eq.f32.partialorder %v11, %v34
  %vm79 = vcmp.eq.f32.partialorder %v12, %v37
  %vm80 = vcmp.eq.f32.partialorder %v13, %v40
  %vm81 = vcmp.eq.f32.partialorder %v14, %v43
  %vm82 = vcmp.eq.f32.partialorder %v15, %v46
  %vm83 = vcmp.eq.f32.partialorder %v16, %v49
  %vm84 = vcmp.eq.f32.partialorder %v17, %v52
  %vm85 = vcmp.eq.f32.partialorder %v18, %v55
  %vm86 = vcmp.eq.f32.partialorder %v19, %v58
  %vm87 = vcmp.eq.f32.partialorder %v20, %v61
  %vm88 = vcmp.eq.f32.partialorder %v21, %v64
  %vm89 = vcmp.eq.f32.partialorder %v22, %v67
  %vm90 = vcmp.eq.f32.partialorder %v23, %v70
  %vm91 = vcmp.eq.f32.partialorder %v24, %v73
  %vm92 = vcmp.eq.f32.partialorder %v25, %v76
  %v93 = vsel %vm77, %v27, 64
  %v94 = vsel %vm78, %v27, 64
  %v95 = vsel %vm79, %v27, 64
  %v96 = vsel %vm80, %v27, 64
  %v97 = vsel %vm81, %v27, 64
  %v98 = vsel %vm82, %v27, 64
  %v99 = vsel %vm83, %v27, 64
  %v100 = vsel %vm84, %v27, 64
  %v101 = vsel %vm85, %v27, 64
  %v102 = vsel %vm86, %v27, 64
  %v103 = vsel %vm87, %v27, 64
  %v104 = vsel %vm88, %v27, 64
  %v105 = vsel %vm89, %v27, 64
  %v106 = vsel %vm90, %v27, 64
  %v107 = vsel %vm91, %v27, 64
  %v108 = vsel %vm92, %v27, 64
  %v109 = vsel %vm28, %v93, 2147483647
  %v110 = vand.u32 %v109, 65535
  %v111 = vshra.s32 %v109, 16
  %v112 = vcvt.s32.f32 %v110
  %v113 = vcvt.s32.f32 %v111
  %114 = vmin.xlane.f32.xlu0 %v113
  %v115 = vpop.xlane.xlu0 %114
  %vm116 = vcmp.eq.f32.partialorder %v113, %v115
  %v117 = vsel %vm116, %v112, inf
  %118 = vmin.xlane.f32.xlu0 %v117
  %v119 = vpop.xlane.xlu0 %118
  %v120 = vcvt.f32.s32 %v119
  %v121 = vcvt.f32.s32 %v115
  %v122 = vshll.u32 %v121, 16
  %v123 = vadd.s32 %v122, %v120
  %v124 = vsel %vm28, %v94, 2147483647
  %v125 = vand.u32 %v124, 65535
  %v126 = vshra.s32 %v124, 16
  %v127 = vcvt.s32.f32 %v125
  %v128 = vcvt.s32.f32 %v126
  %129 = vmin.xlane.f32.xlu0 %v128
  %v130 = vpop.xlane.xlu0 %129
  %vm131 = vcmp.eq.f32.partialorder %v128, %v130
  %v132 = vsel %vm131, %v127, inf
  %133 = vmin.xlane.f32.xlu0 %v132
  %v134 = vpop.xlane.xlu0 %133
  %v135 = vcvt.f32.s32 %v134
  %v136 = vcvt.f32.s32 %v130
  %v137 = vshll.u32 %v136, 16
  %v138 = vadd.s32 %v137, %v135
  %v139 = vsel %vm28, %v95, 2147483647
  %v140 = vand.u32 %v139, 65535
  %v141 = vshra.s32 %v139, 16
  %v142 = vcvt.s32.f32 %v140
  %v143 = vcvt.s32.f32 %v141
  %144 = vmin.xlane.f32.xlu0 %v143
  %v145 = vpop.xlane.xlu0 %144
  %vm146 = vcmp.eq.f32.partialorder %v143, %v145
  %v147 = vsel %vm146, %v142, inf
  %148 = vmin.xlane.f32.xlu0 %v147
  %v149 = vpop.xlane.xlu0 %148
  %v150 = vcvt.f32.s32 %v149
  %v151 = vcvt.f32.s32 %v145
  %v152 = vshll.u32 %v151, 16
  %v153 = vadd.s32 %v152, %v150
  %v154 = vsel %vm28, %v96, 2147483647
  %v155 = vand.u32 %v154, 65535
  %v156 = vshra.s32 %v154, 16
  %v157 = vcvt.s32.f32 %v155
  %v158 = vcvt.s32.f32 %v156
  %159 = vmin.xlane.f32.xlu0 %v158
  %v160 = vpop.xlane.xlu0 %159
  %vm161 = vcmp.eq.f32.partialorder %v158, %v160
  %v162 = vsel %vm161, %v157, inf
  %163 = vmin.xlane.f32.xlu0 %v162
  %v164 = vpop.xlane.xlu0 %163
  %v165 = vcvt.f32.s32 %v164
  %v166 = vcvt.f32.s32 %v160
  %v167 = vshll.u32 %v166, 16
  %v168 = vadd.s32 %v167, %v165
  %v169 = vsel %vm28, %v97, 2147483647
  %v170 = vand.u32 %v169, 65535
  %v171 = vshra.s32 %v169, 16
  %v172 = vcvt.s32.f32 %v170
  %v173 = vcvt.s32.f32 %v171
  %174 = vmin.xlane.f32.xlu0 %v173
  %v175 = vpop.xlane.xlu0 %174
  %vm176 = vcmp.eq.f32.partialorder %v173, %v175
  %v177 = vsel %vm176, %v172, inf
  %178 = vmin.xlane.f32.xlu0 %v177
  %v179 = vpop.xlane.xlu0 %178
  %v180 = vcvt.f32.s32 %v179
  %v181 = vcvt.f32.s32 %v175
  %v182 = vshll.u32 %v181, 16
  %v183 = vadd.s32 %v182, %v180
  %v184 = vsel %vm28, %v98, 2147483647
  %v185 = vand.u32 %v184, 65535
  %v186 = vshra.s32 %v184, 16
  %v187 = vcvt.s32.f32 %v185
  %v188 = vcvt.s32.f32 %v186
  %189 = vmin.xlane.f32.xlu0 %v188
  %v190 = vpop.xlane.xlu0 %189
  %vm191 = vcmp.eq.f32.partialorder %v188, %v190
  %v192 = vsel %vm191, %v187, inf
  %193 = vmin.xlane.f32.xlu0 %v192
  %v194 = vpop.xlane.xlu0 %193
  %v195 = vcvt.f32.s32 %v194
  %v196 = vcvt.f32.s32 %v190
  %v197 = vshll.u32 %v196, 16
  %v198 = vadd.s32 %v197, %v195
  %v199 = vsel %vm28, %v99, 2147483647
  %v200 = vand.u32 %v199, 65535
  %v201 = vshra.s32 %v199, 16
  %v202 = vcvt.s32.f32 %v200
  %v203 = vcvt.s32.f32 %v201
  %204 = vmin.xlane.f32.xlu0 %v203
  %v205 = vpop.xlane.xlu0 %204
  %vm206 = vcmp.eq.f32.partialorder %v203, %v205
  %v207 = vsel %vm206, %v202, inf
  %208 = vmin.xlane.f32.xlu0 %v207
  %v209 = vpop.xlane.xlu0 %208
  %v210 = vcvt.f32.s32 %v209
  %v211 = vcvt.f32.s32 %v205
  %v212 = vshll.u32 %v211, 16
  %v213 = vadd.s32 %v212, %v210
  %v214 = vsel %vm28, %v100, 2147483647
  %v215 = vand.u32 %v214, 65535
  %v216 = vshra.s32 %v214, 16
  %v217 = vcvt.s32.f32 %v215
  %v218 = vcvt.s32.f32 %v216
  %219 = vmin.xlane.f32.xlu0 %v218
  %v220 = vpop.xlane.xlu0 %219
  %vm221 = vcmp.eq.f32.partialorder %v218, %v220
  %v222 = vsel %vm221, %v217, inf
  %223 = vmin.xlane.f32.xlu0 %v222
  %v224 = vpop.xlane.xlu0 %223
  %v225 = vcvt.f32.s32 %v224
  %v226 = vcvt.f32.s32 %v220
  %v227 = vshll.u32 %v226, 16
  %v228 = vadd.s32 %v227, %v225
  %v229 = vsel %vm28, %v101, 2147483647
  %v230 = vand.u32 %v229, 65535
  %v231 = vshra.s32 %v229, 16
  %v232 = vcvt.s32.f32 %v230
  %v233 = vcvt.s32.f32 %v231
  %234 = vmin.xlane.f32.xlu0 %v233
  %v235 = vpop.xlane.xlu0 %234
  %vm236 = vcmp.eq.f32.partialorder %v233, %v235
  %v237 = vsel %vm236, %v232, inf
  %238 = vmin.xlane.f32.xlu0 %v237
  %v239 = vpop.xlane.xlu0 %238
  %v240 = vcvt.f32.s32 %v239
  %v241 = vcvt.f32.s32 %v235
  %v242 = vshll.u32 %v241, 16
  %v243 = vadd.s32 %v242, %v240
  %v244 = vsel %vm28, %v102, 2147483647
  %v245 = vand.u32 %v244, 65535
  %v246 = vshra.s32 %v244, 16
  %v247 = vcvt.s32.f32 %v245
  %v248 = vcvt.s32.f32 %v246
  %249 = vmin.xlane.f32.xlu0 %v248
  %v250 = vpop.xlane.xlu0 %249
  %vm251 = vcmp.eq.f32.partialorder %v248, %v250
  %v252 = vsel %vm251, %v247, inf
  %253 = vmin.xlane.f32.xlu0 %v252
  %v254 = vpop.xlane.xlu0 %253
  %v255 = vcvt.f32.s32 %v254
  %v256 = vcvt.f32.s32 %v250
  %v257 = vshll.u32 %v256, 16
  %v258 = vadd.s32 %v257, %v255
  %v259 = vsel %vm28, %v103, 2147483647
  %v260 = vand.u32 %v259, 65535
  %v261 = vshra.s32 %v259, 16
  %v262 = vcvt.s32.f32 %v260
  %v263 = vcvt.s32.f32 %v261
  %264 = vmin.xlane.f32.xlu0 %v263
  %v265 = vpop.xlane.xlu0 %264
  %vm266 = vcmp.eq.f32.partialorder %v263, %v265
  %v267 = vsel %vm266, %v262, inf
  %268 = vmin.xlane.f32.xlu0 %v267
  %v269 = vpop.xlane.xlu0 %268
  %v270 = vcvt.f32.s32 %v269
  %v271 = vcvt.f32.s32 %v265
  %v272 = vshll.u32 %v271, 16
  %v273 = vadd.s32 %v272, %v270
  %v274 = vsel %vm28, %v104, 2147483647
  %v275 = vand.u32 %v274, 65535
  %v276 = vshra.s32 %v274, 16
  %v277 = vcvt.s32.f32 %v275
  %v278 = vcvt.s32.f32 %v276
  %279 = vmin.xlane.f32.xlu0 %v278
  %v280 = vpop.xlane.xlu0 %279
  %vm281 = vcmp.eq.f32.partialorder %v278, %v280
  %v282 = vsel %vm281, %v277, inf
  %283 = vmin.xlane.f32.xlu0 %v282
  %v284 = vpop.xlane.xlu0 %283
  %v285 = vcvt.f32.s32 %v284
  %v286 = vcvt.f32.s32 %v280
  %v287 = vshll.u32 %v286, 16
  %v288 = vadd.s32 %v287, %v285
  %v289 = vsel %vm28, %v105, 2147483647
  %v290 = vand.u32 %v289, 65535
  %v291 = vshra.s32 %v289, 16
  %v292 = vcvt.s32.f32 %v290
  %v293 = vcvt.s32.f32 %v291
  %294 = vmin.xlane.f32.xlu0 %v293
  %v295 = vpop.xlane.xlu0 %294
  %vm296 = vcmp.eq.f32.partialorder %v293, %v295
  %v297 = vsel %vm296, %v292, inf
  %298 = vmin.xlane.f32.xlu0 %v297
  %v299 = vpop.xlane.xlu0 %298
  %v300 = vcvt.f32.s32 %v299
  %v301 = vcvt.f32.s32 %v295
  %v302 = vshll.u32 %v301, 16
  %v303 = vadd.s32 %v302, %v300
  %v304 = vsel %vm28, %v106, 2147483647
  %v305 = vand.u32 %v304, 65535
  %v306 = vshra.s32 %v304, 16
  %v307 = vcvt.s32.f32 %v305
  %v308 = vcvt.s32.f32 %v306
  %309 = vmin.xlane.f32.xlu0 %v308
  %v310 = vpop.xlane.xlu0 %309
  %vm311 = vcmp.eq.f32.partialorder %v308, %v310
  %v312 = vsel %vm311, %v307, inf
  %313 = vmin.xlane.f32.xlu0 %v312
  %v314 = vpop.xlane.xlu0 %313
  %v315 = vcvt.f32.s32 %v314
  %v316 = vcvt.f32.s32 %v310
  %v317 = vshll.u32 %v316, 16
  %v318 = vadd.s32 %v317, %v315
  %v319 = vsel %vm28, %v107, 2147483647
  %v320 = vand.u32 %v319, 65535
  %v321 = vshra.s32 %v319, 16
  %v322 = vcvt.s32.f32 %v320
  %v323 = vcvt.s32.f32 %v321
  %324 = vmin.xlane.f32.xlu0 %v323
  %v325 = vpop.xlane.xlu0 %324
  %vm326 = vcmp.eq.f32.partialorder %v323, %v325
  %v327 = vsel %vm326, %v322, inf
  %328 = vmin.xlane.f32.xlu0 %v327
  %v329 = vpop.xlane.xlu0 %328
  %v330 = vcvt.f32.s32 %v329
  %v331 = vcvt.f32.s32 %v325
  %v332 = vshll.u32 %v331, 16
  %v333 = vadd.s32 %v332, %v330
  %v334 = vsel %vm28, %v108, 2147483647
  %v335 = vand.u32 %v334, 65535
  %v336 = vshra.s32 %v334, 16
  %v337 = vcvt.s32.f32 %v335
  %v338 = vcvt.s32.f32 %v336
  %339 = vmin.xlane.f32.xlu0 %v338
  %v340 = vpop.xlane.xlu0 %339
  %vm341 = vcmp.eq.f32.partialorder %v338, %v340
  %v342 = vsel %vm341, %v337, inf
  %343 = vmin.xlane.f32.xlu0 %v342
  %v344 = vpop.xlane.xlu0 %343
  %v345 = vcvt.f32.s32 %v344
  %v346 = vcvt.f32.s32 %v340
  %v347 = vshll.u32 %v346, 16
  %v348 = vadd.s32 %v347, %v345
  %vm349 = vcmp.eq.s32.totalorder %v27, %v123
  %vm350 = vcmp.eq.s32.totalorder %v27, %v138
  %vm351 = vcmp.eq.s32.totalorder %v27, %v153
  %vm352 = vcmp.eq.s32.totalorder %v27, %v168
  %vm353 = vcmp.eq.s32.totalorder %v27, %v183
  %vm354 = vcmp.eq.s32.totalorder %v27, %v198
  %vm355 = vcmp.eq.s32.totalorder %v27, %v213
  %vm356 = vcmp.eq.s32.totalorder %v27, %v228
  %vm357 = vcmp.eq.s32.totalorder %v27, %v243
  %vm358 = vcmp.eq.s32.totalorder %v27, %v258
  %vm359 = vcmp.eq.s32.totalorder %v27, %v273
  %vm360 = vcmp.eq.s32.totalorder %v27, %v288
  %vm361 = vcmp.eq.s32.totalorder %v27, %v303
  %vm362 = vcmp.eq.s32.totalorder %v27, %v318
  %vm363 = vcmp.eq.s32.totalorder %v27, %v333
  %vm364 = vcmp.eq.s32.totalorder %v27, %v348
  %v365 = vsel %vm349, -3.4028235e+38, %v10
  %v366 = vsel %vm350, -3.4028235e+38, %v11
  %v367 = vsel %vm351, -3.4028235e+38, %v12
  %v368 = vsel %vm352, -3.4028235e+38, %v13
  %v369 = vsel %vm353, -3.4028235e+38, %v14
  %v370 = vsel %vm354, -3.4028235e+38, %v15
  %v371 = vsel %vm355, -3.4028235e+38, %v16
  %v372 = vsel %vm356, -3.4028235e+38, %v17
  %v373 = vsel %vm357, -3.4028235e+38, %v18
  %v374 = vsel %vm358, -3.4028235e+38, %v19
  %v375 = vsel %vm359, -3.4028235e+38, %v20
  %v376 = vsel %vm360, -3.4028235e+38, %v21
  %v377 = vsel %vm361, -3.4028235e+38, %v22
  %v378 = vsel %vm362, -3.4028235e+38, %v23
  %v379 = vsel %vm363, -3.4028235e+38, %v24
  %v380 = vsel %vm364, -3.4028235e+38, %v25
  %v381 = vsel %vm28, %v365, -inf
  %382 = vmax.xlane.f32.xlu0 %v381
  %v383 = vpop.xlane.xlu0 %382
  %v384 = vsel %vm28, %v366, -inf
  %385 = vmax.xlane.f32.xlu0 %v384
  %v386 = vpop.xlane.xlu0 %385
  %v387 = vsel %vm28, %v367, -inf
  %388 = vmax.xlane.f32.xlu0 %v387
  %v389 = vpop.xlane.xlu0 %388
  %v390 = vsel %vm28, %v368, -inf
  %391 = vmax.xlane.f32.xlu0 %v390
  %v392 = vpop.xlane.xlu0 %391
  %v393 = vsel %vm28, %v369, -inf
  %394 = vmax.xlane.f32.xlu0 %v393
  %v395 = vpop.xlane.xlu0 %394
  %v396 = vsel %vm28, %v370, -inf
  %397 = vmax.xlane.f32.xlu0 %v396
  %v398 = vpop.xlane.xlu0 %397
  %v399 = vsel %vm28, %v371, -inf
  %400 = vmax.xlane.f32.xlu0 %v399
  %v401 = vpop.xlane.xlu0 %400
  %v402 = vsel %vm28, %v372, -inf
  %403 = vmax.xlane.f32.xlu0 %v402
  %v404 = vpop.xlane.xlu0 %403
  %v405 = vsel %vm28, %v373, -inf
  %406 = vmax.xlane.f32.xlu0 %v405
  %v407 = vpop.xlane.xlu0 %406
  %v408 = vsel %vm28, %v374, -inf
  %409 = vmax.xlane.f32.xlu0 %v408
  %v410 = vpop.xlane.xlu0 %409
  %v411 = vsel %vm28, %v375, -inf
  %412 = vmax.xlane.f32.xlu0 %v411
  %v413 = vpop.xlane.xlu0 %412
  %v414 = vsel %vm28, %v376, -inf
  %415 = vmax.xlane.f32.xlu0 %v414
  %v416 = vpop.xlane.xlu0 %415
  %v417 = vsel %vm28, %v377, -inf
  %418 = vmax.xlane.f32.xlu0 %v417
  %v419 = vpop.xlane.xlu0 %418
  %v420 = vsel %vm28, %v378, -inf
  %421 = vmax.xlane.f32.xlu0 %v420
  %v422 = vpop.xlane.xlu0 %421
  %v423 = vsel %vm28, %v379, -inf
  %424 = vmax.xlane.f32.xlu0 %v423
  %v425 = vpop.xlane.xlu0 %424
  %v426 = vsel %vm28, %v380, -inf
  %427 = vmax.xlane.f32.xlu0 %v426
  %v428 = vpop.xlane.xlu0 %427
  %vm429 = vcmp.eq.f32.partialorder %v365, %v383
  %vm430 = vcmp.eq.f32.partialorder %v366, %v386
  %vm431 = vcmp.eq.f32.partialorder %v367, %v389
  %vm432 = vcmp.eq.f32.partialorder %v368, %v392
  %vm433 = vcmp.eq.f32.partialorder %v369, %v395
  %vm434 = vcmp.eq.f32.partialorder %v370, %v398
  %vm435 = vcmp.eq.f32.partialorder %v371, %v401
  %vm436 = vcmp.eq.f32.partialorder %v372, %v404
  %vm437 = vcmp.eq.f32.partialorder %v373, %v407
  %vm438 = vcmp.eq.f32.partialorder %v374, %v410
  %vm439 = vcmp.eq.f32.partialorder %v375, %v413
  %vm440 = vcmp.eq.f32.partialorder %v376, %v416
  %vm441 = vcmp.eq.f32.partialorder %v377, %v419
  %vm442 = vcmp.eq.f32.partialorder %v378, %v422
  %vm443 = vcmp.eq.f32.partialorder %v379, %v425
  %vm444 = vcmp.eq.f32.partialorder %v380, %v428
  %v445 = vsel %vm429, %v27, 64
  %v446 = vsel %vm430, %v27, 64
  %v447 = vsel %vm431, %v27, 64
  %v448 = vsel %vm432, %v27, 64
  %v449 = vsel %vm433, %v27, 64
  %v450 = vsel %vm434, %v27, 64
  %v451 = vsel %vm435, %v27, 64
  %v452 = vsel %vm436, %v27, 64
  %v453 = vsel %vm437, %v27, 64
  %v454 = vsel %vm438, %v27, 64
  %v455 = vsel %vm439, %v27, 64
  %v456 = vsel %vm440, %v27, 64
  %v457 = vsel %vm441, %v27, 64
  %v458 = vsel %vm442, %v27, 64
  %v459 = vsel %vm443, %v27, 64
  %v460 = vsel %vm444, %v27, 64
  %v461 = vsel %vm28, %v445, 2147483647
  %v462 = vand.u32 %v461, 65535
  %v463 = vshra.s32 %v461, 16
  %v464 = vcvt.s32.f32 %v462
  %v465 = vcvt.s32.f32 %v463
  %466 = vmin.xlane.f32.xlu0 %v465
  %v467 = vpop.xlane.xlu0 %466
  %vm468 = vcmp.eq.f32.partialorder %v465, %v467
  %v469 = vsel %vm468, %v464, inf
  %470 = vmin.xlane.f32.xlu0 %v469
  %v471 = vpop.xlane.xlu0 %470
  %v472 = vcvt.f32.s32 %v471
  %v473 = vcvt.f32.s32 %v467
  %v474 = vshll.u32 %v473, 16
  %v475 = vadd.s32 %v474, %v472
  %v476 = vsel %vm28, %v446, 2147483647
  %v477 = vand.u32 %v476, 65535
  %v478 = vshra.s32 %v476, 16
  %v479 = vcvt.s32.f32 %v477
  %v480 = vcvt.s32.f32 %v478
  %481 = vmin.xlane.f32.xlu0 %v480
  %v482 = vpop.xlane.xlu0 %481
  %vm483 = vcmp.eq.f32.partialorder %v480, %v482
  %v484 = vsel %vm483, %v479, inf
  %485 = vmin.xlane.f32.xlu0 %v484
  %v486 = vpop.xlane.xlu0 %485
  %v487 = vcvt.f32.s32 %v486
  %v488 = vcvt.f32.s32 %v482
  %v489 = vshll.u32 %v488, 16
  %v490 = vadd.s32 %v489, %v487
  %v491 = vsel %vm28, %v447, 2147483647
  %v492 = vand.u32 %v491, 65535
  %v493 = vshra.s32 %v491, 16
  %v494 = vcvt.s32.f32 %v492
  %v495 = vcvt.s32.f32 %v493
  %496 = vmin.xlane.f32.xlu0 %v495
  %v497 = vpop.xlane.xlu0 %496
  %vm498 = vcmp.eq.f32.partialorder %v495, %v497
  %v499 = vsel %vm498, %v494, inf
  %500 = vmin.xlane.f32.xlu0 %v499
  %v501 = vpop.xlane.xlu0 %500
  %v502 = vcvt.f32.s32 %v501
  %v503 = vcvt.f32.s32 %v497
  %v504 = vshll.u32 %v503, 16
  %v505 = vadd.s32 %v504, %v502
  %v506 = vsel %vm28, %v448, 2147483647
  %v507 = vand.u32 %v506, 65535
  %v508 = vshra.s32 %v506, 16
  %v509 = vcvt.s32.f32 %v507
  %v510 = vcvt.s32.f32 %v508
  %511 = vmin.xlane.f32.xlu0 %v510
  %v512 = vpop.xlane.xlu0 %511
  %vm513 = vcmp.eq.f32.partialorder %v510, %v512
  %v514 = vsel %vm513, %v509, inf
  %515 = vmin.xlane.f32.xlu0 %v514
  %v516 = vpop.xlane.xlu0 %515
  %v517 = vcvt.f32.s32 %v516
  %v518 = vcvt.f32.s32 %v512
  %v519 = vshll.u32 %v518, 16
  %v520 = vadd.s32 %v519, %v517
  %v521 = vsel %vm28, %v449, 2147483647
  %v522 = vand.u32 %v521, 65535
  %v523 = vshra.s32 %v521, 16
  %v524 = vcvt.s32.f32 %v522
  %v525 = vcvt.s32.f32 %v523
  %526 = vmin.xlane.f32.xlu0 %v525
  %v527 = vpop.xlane.xlu0 %526
  %vm528 = vcmp.eq.f32.partialorder %v525, %v527
  %v529 = vsel %vm528, %v524, inf
  %530 = vmin.xlane.f32.xlu0 %v529
  %v531 = vpop.xlane.xlu0 %530
  %v532 = vcvt.f32.s32 %v531
  %v533 = vcvt.f32.s32 %v527
  %v534 = vshll.u32 %v533, 16
  %v535 = vadd.s32 %v534, %v532
  %v536 = vsel %vm28, %v450, 2147483647
  %v537 = vand.u32 %v536, 65535
  %v538 = vshra.s32 %v536, 16
  %v539 = vcvt.s32.f32 %v537
  %v540 = vcvt.s32.f32 %v538
  %541 = vmin.xlane.f32.xlu0 %v540
  %v542 = vpop.xlane.xlu0 %541
  %vm543 = vcmp.eq.f32.partialorder %v540, %v542
  %v544 = vsel %vm543, %v539, inf
  %545 = vmin.xlane.f32.xlu0 %v544
  %v546 = vpop.xlane.xlu0 %545
  %v547 = vcvt.f32.s32 %v546
  %v548 = vcvt.f32.s32 %v542
  %v549 = vshll.u32 %v548, 16
  %v550 = vadd.s32 %v549, %v547
  %v551 = vsel %vm28, %v451, 2147483647
  %v552 = vand.u32 %v551, 65535
  %v553 = vshra.s32 %v551, 16
  %v554 = vcvt.s32.f32 %v552
  %v555 = vcvt.s32.f32 %v553
  %556 = vmin.xlane.f32.xlu0 %v555
  %v557 = vpop.xlane.xlu0 %556
  %vm558 = vcmp.eq.f32.partialorder %v555, %v557
  %v559 = vsel %vm558, %v554, inf
  %560 = vmin.xlane.f32.xlu0 %v559
  %v561 = vpop.xlane.xlu0 %560
  %v562 = vcvt.f32.s32 %v561
  %v563 = vcvt.f32.s32 %v557
  %v564 = vshll.u32 %v563, 16
  %v565 = vadd.s32 %v564, %v562
  %v566 = vsel %vm28, %v452, 2147483647
  %v567 = vand.u32 %v566, 65535
  %v568 = vshra.s32 %v566, 16
  %v569 = vcvt.s32.f32 %v567
  %v570 = vcvt.s32.f32 %v568
  %571 = vmin.xlane.f32.xlu0 %v570
  %v572 = vpop.xlane.xlu0 %571
  %vm573 = vcmp.eq.f32.partialorder %v570, %v572
  %v574 = vsel %vm573, %v569, inf
  %575 = vmin.xlane.f32.xlu0 %v574
  %v576 = vpop.xlane.xlu0 %575
  %v577 = vcvt.f32.s32 %v576
  %v578 = vcvt.f32.s32 %v572
  %v579 = vshll.u32 %v578, 16
  %v580 = vadd.s32 %v579, %v577
  %v581 = vsel %vm28, %v453, 2147483647
  %v582 = vand.u32 %v581, 65535
  %v583 = vshra.s32 %v581, 16
  %v584 = vcvt.s32.f32 %v582
  %v585 = vcvt.s32.f32 %v583
  %586 = vmin.xlane.f32.xlu0 %v585
  %v587 = vpop.xlane.xlu0 %586
  %vm588 = vcmp.eq.f32.partialorder %v585, %v587
  %v589 = vsel %vm588, %v584, inf
  %590 = vmin.xlane.f32.xlu0 %v589
  %v591 = vpop.xlane.xlu0 %590
  %v592 = vcvt.f32.s32 %v591
  %v593 = vcvt.f32.s32 %v587
  %v594 = vshll.u32 %v593, 16
  %v595 = vadd.s32 %v594, %v592
  %v596 = vsel %vm28, %v454, 2147483647
  %v597 = vand.u32 %v596, 65535
  %v598 = vshra.s32 %v596, 16
  %v599 = vcvt.s32.f32 %v597
  %v600 = vcvt.s32.f32 %v598
  %601 = vmin.xlane.f32.xlu0 %v600
  %v602 = vpop.xlane.xlu0 %601
  %vm603 = vcmp.eq.f32.partialorder %v600, %v602
  %v604 = vsel %vm603, %v599, inf
  %605 = vmin.xlane.f32.xlu0 %v604
  %v606 = vpop.xlane.xlu0 %605
  %v607 = vcvt.f32.s32 %v606
  %v608 = vcvt.f32.s32 %v602
  %v609 = vshll.u32 %v608, 16
  %v610 = vadd.s32 %v609, %v607
  %v611 = vsel %vm28, %v455, 2147483647
  %v612 = vand.u32 %v611, 65535
  %v613 = vshra.s32 %v611, 16
  %v614 = vcvt.s32.f32 %v612
  %v615 = vcvt.s32.f32 %v613
  %616 = vmin.xlane.f32.xlu0 %v615
  %v617 = vpop.xlane.xlu0 %616
  %vm618 = vcmp.eq.f32.partialorder %v615, %v617
  %v619 = vsel %vm618, %v614, inf
  %620 = vmin.xlane.f32.xlu0 %v619
  %v621 = vpop.xlane.xlu0 %620
  %v622 = vcvt.f32.s32 %v621
  %v623 = vcvt.f32.s32 %v617
  %v624 = vshll.u32 %v623, 16
  %v625 = vadd.s32 %v624, %v622
  %v626 = vsel %vm28, %v456, 2147483647
  %v627 = vand.u32 %v626, 65535
  %v628 = vshra.s32 %v626, 16
  %v629 = vcvt.s32.f32 %v627
  %v630 = vcvt.s32.f32 %v628
  %631 = vmin.xlane.f32.xlu0 %v630
  %v632 = vpop.xlane.xlu0 %631
  %vm633 = vcmp.eq.f32.partialorder %v630, %v632
  %v634 = vsel %vm633, %v629, inf
  %635 = vmin.xlane.f32.xlu0 %v634
  %v636 = vpop.xlane.xlu0 %635
  %v637 = vcvt.f32.s32 %v636
  %v638 = vcvt.f32.s32 %v632
  %v639 = vshll.u32 %v638, 16
  %v640 = vadd.s32 %v639, %v637
  %v641 = vsel %vm28, %v457, 2147483647
  %v642 = vand.u32 %v641, 65535
  %v643 = vshra.s32 %v641, 16
  %v644 = vcvt.s32.f32 %v642
  %v645 = vcvt.s32.f32 %v643
  %646 = vmin.xlane.f32.xlu0 %v645
  %v647 = vpop.xlane.xlu0 %646
  %vm648 = vcmp.eq.f32.partialorder %v645, %v647
  %v649 = vsel %vm648, %v644, inf
  %650 = vmin.xlane.f32.xlu0 %v649
  %v651 = vpop.xlane.xlu0 %650
  %v652 = vcvt.f32.s32 %v651
  %v653 = vcvt.f32.s32 %v647
  %v654 = vshll.u32 %v653, 16
  %v655 = vadd.s32 %v654, %v652
  %v656 = vsel %vm28, %v458, 2147483647
  %v657 = vand.u32 %v656, 65535
  %v658 = vshra.s32 %v656, 16
  %v659 = vcvt.s32.f32 %v657
  %v660 = vcvt.s32.f32 %v658
  %661 = vmin.xlane.f32.xlu0 %v660
  %v662 = vpop.xlane.xlu0 %661
  %vm663 = vcmp.eq.f32.partialorder %v660, %v662
  %v664 = vsel %vm663, %v659, inf
  %665 = vmin.xlane.f32.xlu0 %v664
  %v666 = vpop.xlane.xlu0 %665
  %v667 = vcvt.f32.s32 %v666
  %v668 = vcvt.f32.s32 %v662
  %v669 = vshll.u32 %v668, 16
  %v670 = vadd.s32 %v669, %v667
  %v671 = vsel %vm28, %v459, 2147483647
  %v672 = vand.u32 %v671, 65535
  %v673 = vshra.s32 %v671, 16
  %v674 = vcvt.s32.f32 %v672
  %v675 = vcvt.s32.f32 %v673
  %676 = vmin.xlane.f32.xlu0 %v675
  %v677 = vpop.xlane.xlu0 %676
  %vm678 = vcmp.eq.f32.partialorder %v675, %v677
  %v679 = vsel %vm678, %v674, inf
  %680 = vmin.xlane.f32.xlu0 %v679
  %v681 = vpop.xlane.xlu0 %680
  %v682 = vcvt.f32.s32 %v681
  %v683 = vcvt.f32.s32 %v677
  %v684 = vshll.u32 %v683, 16
  %v685 = vadd.s32 %v684, %v682
  %v686 = vsel %vm28, %v460, 2147483647
  %v687 = vand.u32 %v686, 65535
  %v688 = vshra.s32 %v686, 16
  %v689 = vcvt.s32.f32 %v687
  %v690 = vcvt.s32.f32 %v688
  %691 = vmin.xlane.f32.xlu0 %v690
  %v692 = vpop.xlane.xlu0 %691
  %vm693 = vcmp.eq.f32.partialorder %v690, %v692
  %v694 = vsel %vm693, %v689, inf
  %695 = vmin.xlane.f32.xlu0 %v694
  %v696 = vpop.xlane.xlu0 %695
  %v697 = vcvt.f32.s32 %v696
  %v698 = vcvt.f32.s32 %v692
  %v699 = vshll.u32 %v698, 16
  %v700 = vadd.s32 %v699, %v697
  %vm701 = vcmp.eq.s32.totalorder %v27, %v475
  %vm702 = vcmp.eq.s32.totalorder %v27, %v490
  %vm703 = vcmp.eq.s32.totalorder %v27, %v505
  %vm704 = vcmp.eq.s32.totalorder %v27, %v520
  %vm705 = vcmp.eq.s32.totalorder %v27, %v535
  %vm706 = vcmp.eq.s32.totalorder %v27, %v550
  %vm707 = vcmp.eq.s32.totalorder %v27, %v565
  %vm708 = vcmp.eq.s32.totalorder %v27, %v580
  %vm709 = vcmp.eq.s32.totalorder %v27, %v595
  %vm710 = vcmp.eq.s32.totalorder %v27, %v610
  %vm711 = vcmp.eq.s32.totalorder %v27, %v625
  %vm712 = vcmp.eq.s32.totalorder %v27, %v640
  %vm713 = vcmp.eq.s32.totalorder %v27, %v655
  %vm714 = vcmp.eq.s32.totalorder %v27, %v670
  %vm715 = vcmp.eq.s32.totalorder %v27, %v685
  %vm716 = vcmp.eq.s32.totalorder %v27, %v700
  %v717 = vsel %vm701, -3.4028235e+38, %v365
  %v718 = vsel %vm702, -3.4028235e+38, %v366
  %v719 = vsel %vm703, -3.4028235e+38, %v367
  %v720 = vsel %vm704, -3.4028235e+38, %v368
  %v721 = vsel %vm705, -3.4028235e+38, %v369
  %v722 = vsel %vm706, -3.4028235e+38, %v370
  %v723 = vsel %vm707, -3.4028235e+38, %v371
  %v724 = vsel %vm708, -3.4028235e+38, %v372
  %v725 = vsel %vm709, -3.4028235e+38, %v373
  %v726 = vsel %vm710, -3.4028235e+38, %v374
  %v727 = vsel %vm711, -3.4028235e+38, %v375
  %v728 = vsel %vm712, -3.4028235e+38, %v376
  %v729 = vsel %vm713, -3.4028235e+38, %v377
  %v730 = vsel %vm714, -3.4028235e+38, %v378
  %v731 = vsel %vm715, -3.4028235e+38, %v379
  %v732 = vsel %vm716, -3.4028235e+38, %v380
  %v733 = vsel %vm28, %v717, -inf
  %734 = vmax.xlane.f32.xlu0 %v733
  %v735 = vpop.xlane.xlu0 %734
  %v736 = vsel %vm28, %v718, -inf
  %737 = vmax.xlane.f32.xlu0 %v736
  %v738 = vpop.xlane.xlu0 %737
  %v739 = vsel %vm28, %v719, -inf
  %740 = vmax.xlane.f32.xlu0 %v739
  %v741 = vpop.xlane.xlu0 %740
  %v742 = vsel %vm28, %v720, -inf
  %743 = vmax.xlane.f32.xlu0 %v742
  %v744 = vpop.xlane.xlu0 %743
  %v745 = vsel %vm28, %v721, -inf
  %746 = vmax.xlane.f32.xlu0 %v745
  %v747 = vpop.xlane.xlu0 %746
  %v748 = vsel %vm28, %v722, -inf
  %749 = vmax.xlane.f32.xlu0 %v748
  %v750 = vpop.xlane.xlu0 %749
  %v751 = vsel %vm28, %v723, -inf
  %752 = vmax.xlane.f32.xlu0 %v751
  %v753 = vpop.xlane.xlu0 %752
  %v754 = vsel %vm28, %v724, -inf
  %755 = vmax.xlane.f32.xlu0 %v754
  %v756 = vpop.xlane.xlu0 %755
  %v757 = vsel %vm28, %v725, -inf
  %758 = vmax.xlane.f32.xlu0 %v757
  %v759 = vpop.xlane.xlu0 %758
  %v760 = vsel %vm28, %v726, -inf
  %761 = vmax.xlane.f32.xlu0 %v760
  %v762 = vpop.xlane.xlu0 %761
  %v763 = vsel %vm28, %v727, -inf
  %764 = vmax.xlane.f32.xlu0 %v763
  %v765 = vpop.xlane.xlu0 %764
  %v766 = vsel %vm28, %v728, -inf
  %767 = vmax.xlane.f32.xlu0 %v766
  %v768 = vpop.xlane.xlu0 %767
  %v769 = vsel %vm28, %v729, -inf
  %770 = vmax.xlane.f32.xlu0 %v769
  %v771 = vpop.xlane.xlu0 %770
  %v772 = vsel %vm28, %v730, -inf
  %773 = vmax.xlane.f32.xlu0 %v772
  %v774 = vpop.xlane.xlu0 %773
  %v775 = vsel %vm28, %v731, -inf
  %776 = vmax.xlane.f32.xlu0 %v775
  %v777 = vpop.xlane.xlu0 %776
  %v778 = vsel %vm28, %v732, -inf
  %779 = vmax.xlane.f32.xlu0 %v778
  %v780 = vpop.xlane.xlu0 %779
  %vm781 = vcmp.eq.f32.partialorder %v717, %v735
  %vm782 = vcmp.eq.f32.partialorder %v718, %v738
  %vm783 = vcmp.eq.f32.partialorder %v719, %v741
  %vm784 = vcmp.eq.f32.partialorder %v720, %v744
  %vm785 = vcmp.eq.f32.partialorder %v721, %v747
  %vm786 = vcmp.eq.f32.partialorder %v722, %v750
  %vm787 = vcmp.eq.f32.partialorder %v723, %v753
  %vm788 = vcmp.eq.f32.partialorder %v724, %v756
  %vm789 = vcmp.eq.f32.partialorder %v725, %v759
  %vm790 = vcmp.eq.f32.partialorder %v726, %v762
  %vm791 = vcmp.eq.f32.partialorder %v727, %v765
  %vm792 = vcmp.eq.f32.partialorder %v728, %v768
  %vm793 = vcmp.eq.f32.partialorder %v729, %v771
  %vm794 = vcmp.eq.f32.partialorder %v730, %v774
  %vm795 = vcmp.eq.f32.partialorder %v731, %v777
  %vm796 = vcmp.eq.f32.partialorder %v732, %v780
  %v797 = vsel %vm781, %v27, 64
  %v798 = vsel %vm782, %v27, 64
  %v799 = vsel %vm783, %v27, 64
  %v800 = vsel %vm784, %v27, 64
  %v801 = vsel %vm785, %v27, 64
  %v802 = vsel %vm786, %v27, 64
  %v803 = vsel %vm787, %v27, 64
  %v804 = vsel %vm788, %v27, 64
  %v805 = vsel %vm789, %v27, 64
  %v806 = vsel %vm790, %v27, 64
  %v807 = vsel %vm791, %v27, 64
  %v808 = vsel %vm792, %v27, 64
  %v809 = vsel %vm793, %v27, 64
  %v810 = vsel %vm794, %v27, 64
  %v811 = vsel %vm795, %v27, 64
  %v812 = vsel %vm796, %v27, 64
  %v813 = vsel %vm28, %v797, 2147483647
  %v814 = vand.u32 %v813, 65535
  %v815 = vshra.s32 %v813, 16
  %v816 = vcvt.s32.f32 %v814
  %v817 = vcvt.s32.f32 %v815
  %818 = vmin.xlane.f32.xlu0 %v817
  %v819 = vpop.xlane.xlu0 %818
  %vm820 = vcmp.eq.f32.partialorder %v817, %v819
  %v821 = vsel %vm820, %v816, inf
  %822 = vmin.xlane.f32.xlu0 %v821
  %v823 = vpop.xlane.xlu0 %822
  %v824 = vcvt.f32.s32 %v823
  %v825 = vcvt.f32.s32 %v819
  %v826 = vshll.u32 %v825, 16
  %v827 = vadd.s32 %v826, %v824
  %v828 = vsel %vm28, %v798, 2147483647
  %v829 = vand.u32 %v828, 65535
  %v830 = vshra.s32 %v828, 16
  %v831 = vcvt.s32.f32 %v829
  %v832 = vcvt.s32.f32 %v830
  %833 = vmin.xlane.f32.xlu0 %v832
  %v834 = vpop.xlane.xlu0 %833
  %vm835 = vcmp.eq.f32.partialorder %v832, %v834
  %v836 = vsel %vm835, %v831, inf
  %837 = vmin.xlane.f32.xlu0 %v836
  %v838 = vpop.xlane.xlu0 %837
  %v839 = vcvt.f32.s32 %v838
  %v840 = vcvt.f32.s32 %v834
  %v841 = vshll.u32 %v840, 16
  %v842 = vadd.s32 %v841, %v839
  %v843 = vsel %vm28, %v799, 2147483647
  %v844 = vand.u32 %v843, 65535
  %v845 = vshra.s32 %v843, 16
  %v846 = vcvt.s32.f32 %v844
  %v847 = vcvt.s32.f32 %v845
  %848 = vmin.xlane.f32.xlu0 %v847
  %v849 = vpop.xlane.xlu0 %848
  %vm850 = vcmp.eq.f32.partialorder %v847, %v849
  %v851 = vsel %vm850, %v846, inf
  %852 = vmin.xlane.f32.xlu0 %v851
  %v853 = vpop.xlane.xlu0 %852
  %v854 = vcvt.f32.s32 %v853
  %v855 = vcvt.f32.s32 %v849
  %v856 = vshll.u32 %v855, 16
  %v857 = vadd.s32 %v856, %v854
  %v858 = vsel %vm28, %v800, 2147483647
  %v859 = vand.u32 %v858, 65535
  %v860 = vshra.s32 %v858, 16
  %v861 = vcvt.s32.f32 %v859
  %v862 = vcvt.s32.f32 %v860
  %863 = vmin.xlane.f32.xlu0 %v862
  %v864 = vpop.xlane.xlu0 %863
  %vm865 = vcmp.eq.f32.partialorder %v862, %v864
  %v866 = vsel %vm865, %v861, inf
  %867 = vmin.xlane.f32.xlu0 %v866
  %v868 = vpop.xlane.xlu0 %867
  %v869 = vcvt.f32.s32 %v868
  %v870 = vcvt.f32.s32 %v864
  %v871 = vshll.u32 %v870, 16
  %v872 = vadd.s32 %v871, %v869
  %v873 = vsel %vm28, %v801, 2147483647
  %v874 = vand.u32 %v873, 65535
  %v875 = vshra.s32 %v873, 16
  %v876 = vcvt.s32.f32 %v874
  %v877 = vcvt.s32.f32 %v875
  %878 = vmin.xlane.f32.xlu0 %v877
  %v879 = vpop.xlane.xlu0 %878
  %vm880 = vcmp.eq.f32.partialorder %v877, %v879
  %v881 = vsel %vm880, %v876, inf
  %882 = vmin.xlane.f32.xlu0 %v881
  %v883 = vpop.xlane.xlu0 %882
  %v884 = vcvt.f32.s32 %v883
  %v885 = vcvt.f32.s32 %v879
  %v886 = vshll.u32 %v885, 16
  %v887 = vadd.s32 %v886, %v884
  %v888 = vsel %vm28, %v802, 2147483647
  %v889 = vand.u32 %v888, 65535
  %v890 = vshra.s32 %v888, 16
  %v891 = vcvt.s32.f32 %v889
  %v892 = vcvt.s32.f32 %v890
  %893 = vmin.xlane.f32.xlu0 %v892
  %v894 = vpop.xlane.xlu0 %893
  %vm895 = vcmp.eq.f32.partialorder %v892, %v894
  %v896 = vsel %vm895, %v891, inf
  %897 = vmin.xlane.f32.xlu0 %v896
  %v898 = vpop.xlane.xlu0 %897
  %v899 = vcvt.f32.s32 %v898
  %v900 = vcvt.f32.s32 %v894
  %v901 = vshll.u32 %v900, 16
  %v902 = vadd.s32 %v901, %v899
  %v903 = vsel %vm28, %v803, 2147483647
  %v904 = vand.u32 %v903, 65535
  %v905 = vshra.s32 %v903, 16
  %v906 = vcvt.s32.f32 %v904
  %v907 = vcvt.s32.f32 %v905
  %908 = vmin.xlane.f32.xlu0 %v907
  %v909 = vpop.xlane.xlu0 %908
  %vm910 = vcmp.eq.f32.partialorder %v907, %v909
  %v911 = vsel %vm910, %v906, inf
  %912 = vmin.xlane.f32.xlu0 %v911
  %v913 = vpop.xlane.xlu0 %912
  %v914 = vcvt.f32.s32 %v913
  %v915 = vcvt.f32.s32 %v909
  %v916 = vshll.u32 %v915, 16
  %v917 = vadd.s32 %v916, %v914
  %v918 = vsel %vm28, %v804, 2147483647
  %v919 = vand.u32 %v918, 65535
  %v920 = vshra.s32 %v918, 16
  %v921 = vcvt.s32.f32 %v919
  %v922 = vcvt.s32.f32 %v920
  %923 = vmin.xlane.f32.xlu0 %v922
  %v924 = vpop.xlane.xlu0 %923
  %vm925 = vcmp.eq.f32.partialorder %v922, %v924
  %v926 = vsel %vm925, %v921, inf
  %927 = vmin.xlane.f32.xlu0 %v926
  %v928 = vpop.xlane.xlu0 %927
  %v929 = vcvt.f32.s32 %v928
  %v930 = vcvt.f32.s32 %v924
  %v931 = vshll.u32 %v930, 16
  %v932 = vadd.s32 %v931, %v929
  %v933 = vsel %vm28, %v805, 2147483647
  %v934 = vand.u32 %v933, 65535
  %v935 = vshra.s32 %v933, 16
  %v936 = vcvt.s32.f32 %v934
  %v937 = vcvt.s32.f32 %v935
  %938 = vmin.xlane.f32.xlu0 %v937
  %v939 = vpop.xlane.xlu0 %938
  %vm940 = vcmp.eq.f32.partialorder %v937, %v939
  %v941 = vsel %vm940, %v936, inf
  %942 = vmin.xlane.f32.xlu0 %v941
  %v943 = vpop.xlane.xlu0 %942
  %v944 = vcvt.f32.s32 %v943
  %v945 = vcvt.f32.s32 %v939
  %v946 = vshll.u32 %v945, 16
  %v947 = vadd.s32 %v946, %v944
  %v948 = vsel %vm28, %v806, 2147483647
  %v949 = vand.u32 %v948, 65535
  %v950 = vshra.s32 %v948, 16
  %v951 = vcvt.s32.f32 %v949
  %v952 = vcvt.s32.f32 %v950
  %953 = vmin.xlane.f32.xlu0 %v952
  %v954 = vpop.xlane.xlu0 %953
  %vm955 = vcmp.eq.f32.partialorder %v952, %v954
  %v956 = vsel %vm955, %v951, inf
  %957 = vmin.xlane.f32.xlu0 %v956
  %v958 = vpop.xlane.xlu0 %957
  %v959 = vcvt.f32.s32 %v958
  %v960 = vcvt.f32.s32 %v954
  %v961 = vshll.u32 %v960, 16
  %v962 = vadd.s32 %v961, %v959
  %v963 = vsel %vm28, %v807, 2147483647
  %v964 = vand.u32 %v963, 65535
  %v965 = vshra.s32 %v963, 16
  %v966 = vcvt.s32.f32 %v964
  %v967 = vcvt.s32.f32 %v965
  %968 = vmin.xlane.f32.xlu0 %v967
  %v969 = vpop.xlane.xlu0 %968
  %vm970 = vcmp.eq.f32.partialorder %v967, %v969
  %v971 = vsel %vm970, %v966, inf
  %972 = vmin.xlane.f32.xlu0 %v971
  %v973 = vpop.xlane.xlu0 %972
  %v974 = vcvt.f32.s32 %v973
  %v975 = vcvt.f32.s32 %v969
  %v976 = vshll.u32 %v975, 16
  %v977 = vadd.s32 %v976, %v974
  %v978 = vsel %vm28, %v808, 2147483647
  %v979 = vand.u32 %v978, 65535
  %v980 = vshra.s32 %v978, 16
  %v981 = vcvt.s32.f32 %v979
  %v982 = vcvt.s32.f32 %v980
  %983 = vmin.xlane.f32.xlu0 %v982
  %v984 = vpop.xlane.xlu0 %983
  %vm985 = vcmp.eq.f32.partialorder %v982, %v984
  %v986 = vsel %vm985, %v981, inf
  %987 = vmin.xlane.f32.xlu0 %v986
  %v988 = vpop.xlane.xlu0 %987
  %v989 = vcvt.f32.s32 %v988
  %v990 = vcvt.f32.s32 %v984
  %v991 = vshll.u32 %v990, 16
  %v992 = vadd.s32 %v991, %v989
  %v993 = vsel %vm28, %v809, 2147483647
  %v994 = vand.u32 %v993, 65535
  %v995 = vshra.s32 %v993, 16
  %v996 = vcvt.s32.f32 %v994
  %v997 = vcvt.s32.f32 %v995
  %998 = vmin.xlane.f32.xlu0 %v997
  %v999 = vpop.xlane.xlu0 %998
  %vm1000 = vcmp.eq.f32.partialorder %v997, %v999
  %v1001 = vsel %vm1000, %v996, inf
  %1002 = vmin.xlane.f32.xlu0 %v1001
  %v1003 = vpop.xlane.xlu0 %1002
  %v1004 = vcvt.f32.s32 %v1003
  %v1005 = vcvt.f32.s32 %v999
  %v1006 = vshll.u32 %v1005, 16
  %v1007 = vadd.s32 %v1006, %v1004
  %v1008 = vsel %vm28, %v810, 2147483647
  %v1009 = vand.u32 %v1008, 65535
  %v1010 = vshra.s32 %v1008, 16
  %v1011 = vcvt.s32.f32 %v1009
  %v1012 = vcvt.s32.f32 %v1010
  %1013 = vmin.xlane.f32.xlu0 %v1012
  %v1014 = vpop.xlane.xlu0 %1013
  %vm1015 = vcmp.eq.f32.partialorder %v1012, %v1014
  %v1016 = vsel %vm1015, %v1011, inf
  %1017 = vmin.xlane.f32.xlu0 %v1016
  %v1018 = vpop.xlane.xlu0 %1017
  %v1019 = vcvt.f32.s32 %v1018
  %v1020 = vcvt.f32.s32 %v1014
  %v1021 = vshll.u32 %v1020, 16
  %v1022 = vadd.s32 %v1021, %v1019
  %v1023 = vsel %vm28, %v811, 2147483647
  %v1024 = vand.u32 %v1023, 65535
  %v1025 = vshra.s32 %v1023, 16
  %v1026 = vcvt.s32.f32 %v1024
  %v1027 = vcvt.s32.f32 %v1025
  %1028 = vmin.xlane.f32.xlu0 %v1027
  %v1029 = vpop.xlane.xlu0 %1028
  %vm1030 = vcmp.eq.f32.partialorder %v1027, %v1029
  %v1031 = vsel %vm1030, %v1026, inf
  %1032 = vmin.xlane.f32.xlu0 %v1031
  %v1033 = vpop.xlane.xlu0 %1032
  %v1034 = vcvt.f32.s32 %v1033
  %v1035 = vcvt.f32.s32 %v1029
  %v1036 = vshll.u32 %v1035, 16
  %v1037 = vadd.s32 %v1036, %v1034
  %v1038 = vsel %vm28, %v812, 2147483647
  %v1039 = vand.u32 %v1038, 65535
  %v1040 = vshra.s32 %v1038, 16
  %v1041 = vcvt.s32.f32 %v1039
  %v1042 = vcvt.s32.f32 %v1040
  %1043 = vmin.xlane.f32.xlu0 %v1042
  %v1044 = vpop.xlane.xlu0 %1043
  %vm1045 = vcmp.eq.f32.partialorder %v1042, %v1044
  %v1046 = vsel %vm1045, %v1041, inf
  %1047 = vmin.xlane.f32.xlu0 %v1046
  %v1048 = vpop.xlane.xlu0 %1047
  %v1049 = vcvt.f32.s32 %v1048
  %v1050 = vcvt.f32.s32 %v1044
  %v1051 = vshll.u32 %v1050, 16
  %v1052 = vadd.s32 %v1051, %v1049
  %vm1053 = vcmp.eq.s32.totalorder %v27, %v827
  %vm1054 = vcmp.eq.s32.totalorder %v27, %v842
  %vm1055 = vcmp.eq.s32.totalorder %v27, %v857
  %vm1056 = vcmp.eq.s32.totalorder %v27, %v872
  %vm1057 = vcmp.eq.s32.totalorder %v27, %v887
  %vm1058 = vcmp.eq.s32.totalorder %v27, %v902
  %vm1059 = vcmp.eq.s32.totalorder %v27, %v917
  %vm1060 = vcmp.eq.s32.totalorder %v27, %v932
  %vm1061 = vcmp.eq.s32.totalorder %v27, %v947
  %vm1062 = vcmp.eq.s32.totalorder %v27, %v962
  %vm1063 = vcmp.eq.s32.totalorder %v27, %v977
  %vm1064 = vcmp.eq.s32.totalorder %v27, %v992
  %vm1065 = vcmp.eq.s32.totalorder %v27, %v1007
  %vm1066 = vcmp.eq.s32.totalorder %v27, %v1022
  %vm1067 = vcmp.eq.s32.totalorder %v27, %v1037
  %vm1068 = vcmp.eq.s32.totalorder %v27, %v1052
  %v1069 = vsel %vm1053, -3.4028235e+38, %v717
  %v1070 = vsel %vm1054, -3.4028235e+38, %v718
  %v1071 = vsel %vm1055, -3.4028235e+38, %v719
  %v1072 = vsel %vm1056, -3.4028235e+38, %v720
  %v1073 = vsel %vm1057, -3.4028235e+38, %v721
  %v1074 = vsel %vm1058, -3.4028235e+38, %v722
  %v1075 = vsel %vm1059, -3.4028235e+38, %v723
  %v1076 = vsel %vm1060, -3.4028235e+38, %v724
  %v1077 = vsel %vm1061, -3.4028235e+38, %v725
  %v1078 = vsel %vm1062, -3.4028235e+38, %v726
  %v1079 = vsel %vm1063, -3.4028235e+38, %v727
  %v1080 = vsel %vm1064, -3.4028235e+38, %v728
  %v1081 = vsel %vm1065, -3.4028235e+38, %v729
  %v1082 = vsel %vm1066, -3.4028235e+38, %v730
  %v1083 = vsel %vm1067, -3.4028235e+38, %v731
  %v1084 = vsel %vm1068, -3.4028235e+38, %v732
  %v1085 = vsel %vm28, %v1069, -inf
  %1086 = vmax.xlane.f32.xlu0 %v1085
  %v1087 = vpop.xlane.xlu0 %1086
  %v1088 = vsel %vm28, %v1070, -inf
  %1089 = vmax.xlane.f32.xlu0 %v1088
  %v1090 = vpop.xlane.xlu0 %1089
  %v1091 = vsel %vm28, %v1071, -inf
  %1092 = vmax.xlane.f32.xlu0 %v1091
  %v1093 = vpop.xlane.xlu0 %1092
  %v1094 = vsel %vm28, %v1072, -inf
  %1095 = vmax.xlane.f32.xlu0 %v1094
  %v1096 = vpop.xlane.xlu0 %1095
  %v1097 = vsel %vm28, %v1073, -inf
  %1098 = vmax.xlane.f32.xlu0 %v1097
  %v1099 = vpop.xlane.xlu0 %1098
  %v1100 = vsel %vm28, %v1074, -inf
  %1101 = vmax.xlane.f32.xlu0 %v1100
  %v1102 = vpop.xlane.xlu0 %1101
  %v1103 = vsel %vm28, %v1075, -inf
  %1104 = vmax.xlane.f32.xlu0 %v1103
  %v1105 = vpop.xlane.xlu0 %1104
  %v1106 = vsel %vm28, %v1076, -inf
  %1107 = vmax.xlane.f32.xlu0 %v1106
  %v1108 = vpop.xlane.xlu0 %1107
  %v1109 = vsel %vm28, %v1077, -inf
  %1110 = vmax.xlane.f32.xlu0 %v1109
  %v1111 = vpop.xlane.xlu0 %1110
  %v1112 = vsel %vm28, %v1078, -inf
  %1113 = vmax.xlane.f32.xlu0 %v1112
  %v1114 = vpop.xlane.xlu0 %1113
  %v1115 = vsel %vm28, %v1079, -inf
  %1116 = vmax.xlane.f32.xlu0 %v1115
  %v1117 = vpop.xlane.xlu0 %1116
  %v1118 = vsel %vm28, %v1080, -inf
  %1119 = vmax.xlane.f32.xlu0 %v1118
  %v1120 = vpop.xlane.xlu0 %1119
  %v1121 = vsel %vm28, %v1081, -inf
  %1122 = vmax.xlane.f32.xlu0 %v1121
  %v1123 = vpop.xlane.xlu0 %1122
  %v1124 = vsel %vm28, %v1082, -inf
  %1125 = vmax.xlane.f32.xlu0 %v1124
  %v1126 = vpop.xlane.xlu0 %1125
  %v1127 = vsel %vm28, %v1083, -inf
  %1128 = vmax.xlane.f32.xlu0 %v1127
  %v1129 = vpop.xlane.xlu0 %1128
  %v1130 = vsel %vm28, %v1084, -inf
  %1131 = vmax.xlane.f32.xlu0 %v1130
  %v1132 = vpop.xlane.xlu0 %1131
  %vm1133 = vcmp.eq.f32.partialorder %v1069, %v1087
  %vm1134 = vcmp.eq.f32.partialorder %v1070, %v1090
  %vm1135 = vcmp.eq.f32.partialorder %v1071, %v1093
  %vm1136 = vcmp.eq.f32.partialorder %v1072, %v1096
  %vm1137 = vcmp.eq.f32.partialorder %v1073, %v1099
  %vm1138 = vcmp.eq.f32.partialorder %v1074, %v1102
  %vm1139 = vcmp.eq.f32.partialorder %v1075, %v1105
  %vm1140 = vcmp.eq.f32.partialorder %v1076, %v1108
  %vm1141 = vcmp.eq.f32.partialorder %v1077, %v1111
  %vm1142 = vcmp.eq.f32.partialorder %v1078, %v1114
  %vm1143 = vcmp.eq.f32.partialorder %v1079, %v1117
  %vm1144 = vcmp.eq.f32.partialorder %v1080, %v1120
  %vm1145 = vcmp.eq.f32.partialorder %v1081, %v1123
  %vm1146 = vcmp.eq.f32.partialorder %v1082, %v1126
  %vm1147 = vcmp.eq.f32.partialorder %v1083, %v1129
  %vm1148 = vcmp.eq.f32.partialorder %v1084, %v1132
  %v1149 = vsel %vm1133, %v27, 64
  %v1150 = vsel %vm1134, %v27, 64
  %v1151 = vsel %vm1135, %v27, 64
  %v1152 = vsel %vm1136, %v27, 64
  %v1153 = vsel %vm1137, %v27, 64
  %v1154 = vsel %vm1138, %v27, 64
  %v1155 = vsel %vm1139, %v27, 64
  %v1156 = vsel %vm1140, %v27, 64
  %v1157 = vsel %vm1141, %v27, 64
  %v1158 = vsel %vm1142, %v27, 64
  %v1159 = vsel %vm1143, %v27, 64
  %v1160 = vsel %vm1144, %v27, 64
  %v1161 = vsel %vm1145, %v27, 64
  %v1162 = vsel %vm1146, %v27, 64
  %v1163 = vsel %vm1147, %v27, 64
  %v1164 = vsel %vm1148, %v27, 64
  %v1165 = vsel %vm28, %v1149, 2147483647
  %v1166 = vand.u32 %v1165, 65535
  %v1167 = vshra.s32 %v1165, 16
  %v1168 = vcvt.s32.f32 %v1166
  %v1169 = vcvt.s32.f32 %v1167
  %1170 = vmin.xlane.f32.xlu0 %v1169
  %v1171 = vpop.xlane.xlu0 %1170
  %vm1172 = vcmp.eq.f32.partialorder %v1169, %v1171
  %v1173 = vsel %vm1172, %v1168, inf
  %1174 = vmin.xlane.f32.xlu0 %v1173
  %v1175 = vpop.xlane.xlu0 %1174
  %v1176 = vcvt.f32.s32 %v1175
  %v1177 = vcvt.f32.s32 %v1171
  %v1178 = vshll.u32 %v1177, 16
  %v1179 = vadd.s32 %v1178, %v1176
  %v1180 = vsel %vm28, %v1150, 2147483647
  %v1181 = vand.u32 %v1180, 65535
  %v1182 = vshra.s32 %v1180, 16
  %v1183 = vcvt.s32.f32 %v1181
  %v1184 = vcvt.s32.f32 %v1182
  %1185 = vmin.xlane.f32.xlu0 %v1184
  %v1186 = vpop.xlane.xlu0 %1185
  %vm1187 = vcmp.eq.f32.partialorder %v1184, %v1186
  %v1188 = vsel %vm1187, %v1183, inf
  %1189 = vmin.xlane.f32.xlu0 %v1188
  %v1190 = vpop.xlane.xlu0 %1189
  %v1191 = vcvt.f32.s32 %v1190
  %v1192 = vcvt.f32.s32 %v1186
  %v1193 = vshll.u32 %v1192, 16
  %v1194 = vadd.s32 %v1193, %v1191
  %v1195 = vsel %vm28, %v1151, 2147483647
  %v1196 = vand.u32 %v1195, 65535
  %v1197 = vshra.s32 %v1195, 16
  %v1198 = vcvt.s32.f32 %v1196
  %v1199 = vcvt.s32.f32 %v1197
  %1200 = vmin.xlane.f32.xlu0 %v1199
  %v1201 = vpop.xlane.xlu0 %1200
  %vm1202 = vcmp.eq.f32.partialorder %v1199, %v1201
  %v1203 = vsel %vm1202, %v1198, inf
  %1204 = vmin.xlane.f32.xlu0 %v1203
  %v1205 = vpop.xlane.xlu0 %1204
  %v1206 = vcvt.f32.s32 %v1205
  %v1207 = vcvt.f32.s32 %v1201
  %v1208 = vshll.u32 %v1207, 16
  %v1209 = vadd.s32 %v1208, %v1206
  %v1210 = vsel %vm28, %v1152, 2147483647
  %v1211 = vand.u32 %v1210, 65535
  %v1212 = vshra.s32 %v1210, 16
  %v1213 = vcvt.s32.f32 %v1211
  %v1214 = vcvt.s32.f32 %v1212
  %1215 = vmin.xlane.f32.xlu0 %v1214
  %v1216 = vpop.xlane.xlu0 %1215
  %vm1217 = vcmp.eq.f32.partialorder %v1214, %v1216
  %v1218 = vsel %vm1217, %v1213, inf
  %1219 = vmin.xlane.f32.xlu0 %v1218
  %v1220 = vpop.xlane.xlu0 %1219
  %v1221 = vcvt.f32.s32 %v1220
  %v1222 = vcvt.f32.s32 %v1216
  %v1223 = vshll.u32 %v1222, 16
  %v1224 = vadd.s32 %v1223, %v1221
  %v1225 = vsel %vm28, %v1153, 2147483647
  %v1226 = vand.u32 %v1225, 65535
  %v1227 = vshra.s32 %v1225, 16
  %v1228 = vcvt.s32.f32 %v1226
  %v1229 = vcvt.s32.f32 %v1227
  %1230 = vmin.xlane.f32.xlu0 %v1229
  %v1231 = vpop.xlane.xlu0 %1230
  %vm1232 = vcmp.eq.f32.partialorder %v1229, %v1231
  %v1233 = vsel %vm1232, %v1228, inf
  %1234 = vmin.xlane.f32.xlu0 %v1233
  %v1235 = vpop.xlane.xlu0 %1234
  %v1236 = vcvt.f32.s32 %v1235
  %v1237 = vcvt.f32.s32 %v1231
  %v1238 = vshll.u32 %v1237, 16
  %v1239 = vadd.s32 %v1238, %v1236
  %v1240 = vsel %vm28, %v1154, 2147483647
  %v1241 = vand.u32 %v1240, 65535
  %v1242 = vshra.s32 %v1240, 16
  %v1243 = vcvt.s32.f32 %v1241
  %v1244 = vcvt.s32.f32 %v1242
  %1245 = vmin.xlane.f32.xlu0 %v1244
  %v1246 = vpop.xlane.xlu0 %1245
  %vm1247 = vcmp.eq.f32.partialorder %v1244, %v1246
  %v1248 = vsel %vm1247, %v1243, inf
  %1249 = vmin.xlane.f32.xlu0 %v1248
  %v1250 = vpop.xlane.xlu0 %1249
  %v1251 = vcvt.f32.s32 %v1250
  %v1252 = vcvt.f32.s32 %v1246
  %v1253 = vshll.u32 %v1252, 16
  %v1254 = vadd.s32 %v1253, %v1251
  %v1255 = vsel %vm28, %v1155, 2147483647
  %v1256 = vand.u32 %v1255, 65535
  %v1257 = vshra.s32 %v1255, 16
  %v1258 = vcvt.s32.f32 %v1256
  %v1259 = vcvt.s32.f32 %v1257
  %1260 = vmin.xlane.f32.xlu0 %v1259
  %v1261 = vpop.xlane.xlu0 %1260
  %vm1262 = vcmp.eq.f32.partialorder %v1259, %v1261
  %v1263 = vsel %vm1262, %v1258, inf
  %1264 = vmin.xlane.f32.xlu0 %v1263
  %v1265 = vpop.xlane.xlu0 %1264
  %v1266 = vcvt.f32.s32 %v1265
  %v1267 = vcvt.f32.s32 %v1261
  %v1268 = vshll.u32 %v1267, 16
  %v1269 = vadd.s32 %v1268, %v1266
  %v1270 = vsel %vm28, %v1156, 2147483647
  %v1271 = vand.u32 %v1270, 65535
  %v1272 = vshra.s32 %v1270, 16
  %v1273 = vcvt.s32.f32 %v1271
  %v1274 = vcvt.s32.f32 %v1272
  %1275 = vmin.xlane.f32.xlu0 %v1274
  %v1276 = vpop.xlane.xlu0 %1275
  %vm1277 = vcmp.eq.f32.partialorder %v1274, %v1276
  %v1278 = vsel %vm1277, %v1273, inf
  %1279 = vmin.xlane.f32.xlu0 %v1278
  %v1280 = vpop.xlane.xlu0 %1279
  %v1281 = vcvt.f32.s32 %v1280
  %v1282 = vcvt.f32.s32 %v1276
  %v1283 = vshll.u32 %v1282, 16
  %v1284 = vadd.s32 %v1283, %v1281
  %v1285 = vsel %vm28, %v1157, 2147483647
  %v1286 = vand.u32 %v1285, 65535
  %v1287 = vshra.s32 %v1285, 16
  %v1288 = vcvt.s32.f32 %v1286
  %v1289 = vcvt.s32.f32 %v1287
  %1290 = vmin.xlane.f32.xlu0 %v1289
  %v1291 = vpop.xlane.xlu0 %1290
  %vm1292 = vcmp.eq.f32.partialorder %v1289, %v1291
  %v1293 = vsel %vm1292, %v1288, inf
  %1294 = vmin.xlane.f32.xlu0 %v1293
  %v1295 = vpop.xlane.xlu0 %1294
  %v1296 = vcvt.f32.s32 %v1295
  %v1297 = vcvt.f32.s32 %v1291
  %v1298 = vshll.u32 %v1297, 16
  %v1299 = vadd.s32 %v1298, %v1296
  %v1300 = vsel %vm28, %v1158, 2147483647
  %v1301 = vand.u32 %v1300, 65535
  %v1302 = vshra.s32 %v1300, 16
  %v1303 = vcvt.s32.f32 %v1301
  %v1304 = vcvt.s32.f32 %v1302
  %1305 = vmin.xlane.f32.xlu0 %v1304
  %v1306 = vpop.xlane.xlu0 %1305
  %vm1307 = vcmp.eq.f32.partialorder %v1304, %v1306
  %v1308 = vsel %vm1307, %v1303, inf
  %1309 = vmin.xlane.f32.xlu0 %v1308
  %v1310 = vpop.xlane.xlu0 %1309
  %v1311 = vcvt.f32.s32 %v1310
  %v1312 = vcvt.f32.s32 %v1306
  %v1313 = vshll.u32 %v1312, 16
  %v1314 = vadd.s32 %v1313, %v1311
  %v1315 = vsel %vm28, %v1159, 2147483647
  %v1316 = vand.u32 %v1315, 65535
  %v1317 = vshra.s32 %v1315, 16
  %v1318 = vcvt.s32.f32 %v1316
  %v1319 = vcvt.s32.f32 %v1317
  %1320 = vmin.xlane.f32.xlu0 %v1319
  %v1321 = vpop.xlane.xlu0 %1320
  %vm1322 = vcmp.eq.f32.partialorder %v1319, %v1321
  %v1323 = vsel %vm1322, %v1318, inf
  %1324 = vmin.xlane.f32.xlu0 %v1323
  %v1325 = vpop.xlane.xlu0 %1324
  %v1326 = vcvt.f32.s32 %v1325
  %v1327 = vcvt.f32.s32 %v1321
  %v1328 = vshll.u32 %v1327, 16
  %v1329 = vadd.s32 %v1328, %v1326
  %v1330 = vsel %vm28, %v1160, 2147483647
  %v1331 = vand.u32 %v1330, 65535
  %v1332 = vshra.s32 %v1330, 16
  %v1333 = vcvt.s32.f32 %v1331
  %v1334 = vcvt.s32.f32 %v1332
  %1335 = vmin.xlane.f32.xlu0 %v1334
  %v1336 = vpop.xlane.xlu0 %1335
  %vm1337 = vcmp.eq.f32.partialorder %v1334, %v1336
  %v1338 = vsel %vm1337, %v1333, inf
  %1339 = vmin.xlane.f32.xlu0 %v1338
  %v1340 = vpop.xlane.xlu0 %1339
  %v1341 = vcvt.f32.s32 %v1340
  %v1342 = vcvt.f32.s32 %v1336
  %v1343 = vshll.u32 %v1342, 16
  %v1344 = vadd.s32 %v1343, %v1341
  %v1345 = vsel %vm28, %v1161, 2147483647
  %v1346 = vand.u32 %v1345, 65535
  %v1347 = vshra.s32 %v1345, 16
  %v1348 = vcvt.s32.f32 %v1346
  %v1349 = vcvt.s32.f32 %v1347
  %1350 = vmin.xlane.f32.xlu0 %v1349
  %v1351 = vpop.xlane.xlu0 %1350
  %vm1352 = vcmp.eq.f32.partialorder %v1349, %v1351
  %v1353 = vsel %vm1352, %v1348, inf
  %1354 = vmin.xlane.f32.xlu0 %v1353
  %v1355 = vpop.xlane.xlu0 %1354
  %v1356 = vcvt.f32.s32 %v1355
  %v1357 = vcvt.f32.s32 %v1351
  %v1358 = vshll.u32 %v1357, 16
  %v1359 = vadd.s32 %v1358, %v1356
  %v1360 = vsel %vm28, %v1162, 2147483647
  %v1361 = vand.u32 %v1360, 65535
  %v1362 = vshra.s32 %v1360, 16
  %v1363 = vcvt.s32.f32 %v1361
  %v1364 = vcvt.s32.f32 %v1362
  %1365 = vmin.xlane.f32.xlu0 %v1364
  %v1366 = vpop.xlane.xlu0 %1365
  %vm1367 = vcmp.eq.f32.partialorder %v1364, %v1366
  %v1368 = vsel %vm1367, %v1363, inf
  %1369 = vmin.xlane.f32.xlu0 %v1368
  %v1370 = vpop.xlane.xlu0 %1369
  %v1371 = vcvt.f32.s32 %v1370
  %v1372 = vcvt.f32.s32 %v1366
  %v1373 = vshll.u32 %v1372, 16
  %v1374 = vadd.s32 %v1373, %v1371
  %v1375 = vsel %vm28, %v1163, 2147483647
  %v1376 = vand.u32 %v1375, 65535
  %v1377 = vshra.s32 %v1375, 16
  %v1378 = vcvt.s32.f32 %v1376
  %v1379 = vcvt.s32.f32 %v1377
  %1380 = vmin.xlane.f32.xlu0 %v1379
  %v1381 = vpop.xlane.xlu0 %1380
  %vm1382 = vcmp.eq.f32.partialorder %v1379, %v1381
  %v1383 = vsel %vm1382, %v1378, inf
  %1384 = vmin.xlane.f32.xlu0 %v1383
  %v1385 = vpop.xlane.xlu0 %1384
  %v1386 = vcvt.f32.s32 %v1385
  %v1387 = vcvt.f32.s32 %v1381
  %v1388 = vshll.u32 %v1387, 16
  %v1389 = vadd.s32 %v1388, %v1386
  %v1390 = vsel %vm28, %v1164, 2147483647
  %v1391 = vand.u32 %v1390, 65535
  %v1392 = vshra.s32 %v1390, 16
  %v1393 = vcvt.s32.f32 %v1391
  %v1394 = vcvt.s32.f32 %v1392
  %1395 = vmin.xlane.f32.xlu0 %v1394
  %v1396 = vpop.xlane.xlu0 %1395
  %vm1397 = vcmp.eq.f32.partialorder %v1394, %v1396
  %v1398 = vsel %vm1397, %v1393, inf
  %1399 = vmin.xlane.f32.xlu0 %v1398
  %v1400 = vpop.xlane.xlu0 %1399
  %v1401 = vcvt.f32.s32 %v1400
  %v1402 = vcvt.f32.s32 %v1396
  %v1403 = vshll.u32 %v1402, 16
  %v1404 = vadd.s32 %v1403, %v1401
  %vm1405 = vcmask 7168
  %v1406 = vsel %vm1405, %v31, %v383
  %v1407 = vsel %vm1405, %v34, %v386
  %v1408 = vsel %vm1405, %v37, %v389
  %v1409 = vsel %vm1405, %v40, %v392
  %v1410 = vsel %vm1405, %v43, %v395
  %v1411 = vsel %vm1405, %v46, %v398
  %v1412 = vsel %vm1405, %v49, %v401
  %v1413 = vsel %vm1405, %v52, %v404
  %v1414 = vsel %vm1405, %v55, %v407
  %v1415 = vsel %vm1405, %v58, %v410
  %v1416 = vsel %vm1405, %v61, %v413
  %v1417 = vsel %vm1405, %v64, %v416
  %v1418 = vsel %vm1405, %v67, %v419
  %v1419 = vsel %vm1405, %v70, %v422
  %v1420 = vsel %vm1405, %v73, %v425
  %v1421 = vsel %vm1405, %v76, %v428
  %vm1422 = vcmask 15360
  %v1423 = vsel %vm1422, %v1406, %v735
  %v1424 = vsel %vm1422, %v1407, %v738
  %v1425 = vsel %vm1422, %v1408, %v741
  %v1426 = vsel %vm1422, %v1409, %v744
  %v1427 = vsel %vm1422, %v1410, %v747
  %v1428 = vsel %vm1422, %v1411, %v750
  %v1429 = vsel %vm1422, %v1412, %v753
  %v1430 = vsel %vm1422, %v1413, %v756
  %v1431 = vsel %vm1422, %v1414, %v759
  %v1432 = vsel %vm1422, %v1415, %v762
  %v1433 = vsel %vm1422, %v1416, %v765
  %v1434 = vsel %vm1422, %v1417, %v768
  %v1435 = vsel %vm1422, %v1418, %v771
  %v1436 = vsel %vm1422, %v1419, %v774
  %v1437 = vsel %vm1422, %v1420, %v777
  %v1438 = vsel %vm1422, %v1421, %v780
  %vm1439 = vcmask 23552
  %v1440 = vsel %vm1439, %v1423, %v1087
  %v1441 = vsel %vm1439, %v1424, %v1090
  %v1442 = vsel %vm1439, %v1425, %v1093
  %v1443 = vsel %vm1439, %v1426, %v1096
  %v1444 = vsel %vm1439, %v1427, %v1099
  %v1445 = vsel %vm1439, %v1428, %v1102
  %v1446 = vsel %vm1439, %v1429, %v1105
  %v1447 = vsel %vm1439, %v1430, %v1108
  %v1448 = vsel %vm1439, %v1431, %v1111
  %v1449 = vsel %vm1439, %v1432, %v1114
  %v1450 = vsel %vm1439, %v1433, %v1117
  %v1451 = vsel %vm1439, %v1434, %v1120
  %v1452 = vsel %vm1439, %v1435, %v1123
  %v1453 = vsel %vm1439, %v1436, %v1126
  %v1454 = vsel %vm1439, %v1437, %v1129
  %v1455 = vsel %vm1439, %v1438, %v1132
  %v1456 = vsel %vm1405, %v123, %v475
  %v1457 = vsel %vm1405, %v138, %v490
  %v1458 = vsel %vm1405, %v153, %v505
  %v1459 = vsel %vm1405, %v168, %v520
  %v1460 = vsel %vm1405, %v183, %v535
  %v1461 = vsel %vm1405, %v198, %v550
  %v1462 = vsel %vm1405, %v213, %v565
  %v1463 = vsel %vm1405, %v228, %v580
  %v1464 = vsel %vm1405, %v243, %v595
  %v1465 = vsel %vm1405, %v258, %v610
  %v1466 = vsel %vm1405, %v273, %v625
  %v1467 = vsel %vm1405, %v288, %v640
  %v1468 = vsel %vm1405, %v303, %v655
  %v1469 = vsel %vm1405, %v318, %v670
  %v1470 = vsel %vm1405, %v333, %v685
  %v1471 = vsel %vm1405, %v348, %v700
  %v1472 = vsel %vm1422, %v1456, %v827
  %v1473 = vsel %vm1422, %v1457, %v842
  %v1474 = vsel %vm1422, %v1458, %v857
  %v1475 = vsel %vm1422, %v1459, %v872
  %v1476 = vsel %vm1422, %v1460, %v887
  %v1477 = vsel %vm1422, %v1461, %v902
  %v1478 = vsel %vm1422, %v1462, %v917
  %v1479 = vsel %vm1422, %v1463, %v932
  %v1480 = vsel %vm1422, %v1464, %v947
  %v1481 = vsel %vm1422, %v1465, %v962
  %v1482 = vsel %vm1422, %v1466, %v977
  %v1483 = vsel %vm1422, %v1467, %v992
  %v1484 = vsel %vm1422, %v1468, %v1007
  %v1485 = vsel %vm1422, %v1469, %v1022
  %v1486 = vsel %vm1422, %v1470, %v1037
  %v1487 = vsel %vm1422, %v1471, %v1052
  %v1488 = vsel %vm1439, %v1472, %v1179
  %v1489 = vsel %vm1439, %v1473, %v1194
  %v1490 = vsel %vm1439, %v1474, %v1209
  %v1491 = vsel %vm1439, %v1475, %v1224
  %v1492 = vsel %vm1439, %v1476, %v1239
  %v1493 = vsel %vm1439, %v1477, %v1254
  %v1494 = vsel %vm1439, %v1478, %v1269
  %v1495 = vsel %vm1439, %v1479, %v1284
  %v1496 = vsel %vm1439, %v1480, %v1299
  %v1497 = vsel %vm1439, %v1481, %v1314
  %v1498 = vsel %vm1439, %v1482, %v1329
  %v1499 = vsel %vm1439, %v1483, %v1344
  %v1500 = vsel %vm1439, %v1484, %v1359
  %v1501 = vsel %vm1439, %v1485, %v1374
  %v1502 = vsel %vm1439, %v1486, %v1389
  %v1503 = vsel %vm1439, %v1487, %v1404
  %v1504 = vsub.f32 %v1440, %v31
  %v1505 = vsub.f32 %v1441, %v34
  %v1506 = vsub.f32 %v1442, %v37
  %v1507 = vsub.f32 %v1443, %v40
  %v1508 = vsub.f32 %v1444, %v43
  %v1509 = vsub.f32 %v1445, %v46
  %v1510 = vsub.f32 %v1446, %v49
  %v1511 = vsub.f32 %v1447, %v52
  %v1512 = vsub.f32 %v1448, %v55
  %v1513 = vsub.f32 %v1449, %v58
  %v1514 = vsub.f32 %v1450, %v61
  %v1515 = vsub.f32 %v1451, %v64
  %v1516 = vsub.f32 %v1452, %v67
  %v1517 = vsub.f32 %v1453, %v70
  %v1518 = vsub.f32 %v1454, %v73
  %v1519 = vsub.f32 %v1455, %v76
  %v1520 = vmul.f32 %v1504, 1.442695
  %v1521 = vpow.pop %v1520
  %v1522 = vmul.f32 %v1505, 1.442695
  %v1523 = vpow.pop %v1522
  %v1524 = vmul.f32 %v1506, 1.442695
  %v1525 = vpow.pop %v1524
  %v1526 = vmul.f32 %v1507, 1.442695
  %v1527 = vpow.pop %v1526
  %v1528 = vmul.f32 %v1508, 1.442695
  %v1529 = vpow.pop %v1528
  %v1530 = vmul.f32 %v1509, 1.442695
  %v1531 = vpow.pop %v1530
  %v1532 = vmul.f32 %v1510, 1.442695
  %v1533 = vpow.pop %v1532
  %v1534 = vmul.f32 %v1511, 1.442695
  %v1535 = vpow.pop %v1534
  %v1536 = vmul.f32 %v1512, 1.442695
  %v1537 = vpow.pop %v1536
  %v1538 = vmul.f32 %v1513, 1.442695
  %v1539 = vpow.pop %v1538
  %v1540 = vmul.f32 %v1514, 1.442695
  %v1541 = vpow.pop %v1540
  %v1542 = vmul.f32 %v1515, 1.442695
  %v1543 = vpow.pop %v1542
  %v1544 = vmul.f32 %v1516, 1.442695
  %v1545 = vpow.pop %v1544
  %v1546 = vmul.f32 %v1517, 1.442695
  %v1547 = vpow.pop %v1546
  %v1548 = vmul.f32 %v1518, 1.442695
  %v1549 = vpow.pop %v1548
  %v1550 = vmul.f32 %v1519, 1.442695
  %v1551 = vpow.pop %v1550
  %vm1552 = vcmask 31744
  %v1553 = vsel %vm1552, %v1521, 0.0
  %1554 = vadd.xlane.f32.xlu0 %v1553
  %v1555 = vpop.xlane.xlu0 %1554
  %v1556 = vsel %vm1552, %v1523, 0.0
  %1557 = vadd.xlane.f32.xlu0 %v1556
  %v1558 = vpop.xlane.xlu0 %1557
  %v1559 = vsel %vm1552, %v1525, 0.0
  %1560 = vadd.xlane.f32.xlu0 %v1559
  %v1561 = vpop.xlane.xlu0 %1560
  %v1562 = vsel %vm1552, %v1527, 0.0
  %1563 = vadd.xlane.f32.xlu0 %v1562
  %v1564 = vpop.xlane.xlu0 %1563
  %v1565 = vsel %vm1552, %v1529, 0.0
  %1566 = vadd.xlane.f32.xlu0 %v1565
  %v1567 = vpop.xlane.xlu0 %1566
  %v1568 = vsel %vm1552, %v1531, 0.0
  %1569 = vadd.xlane.f32.xlu0 %v1568
  %v1570 = vpop.xlane.xlu0 %1569
  %v1571 = vsel %vm1552, %v1533, 0.0
  %1572 = vadd.xlane.f32.xlu0 %v1571
  %v1573 = vpop.xlane.xlu0 %1572
  %v1574 = vsel %vm1552, %v1535, 0.0
  %1575 = vadd.xlane.f32.xlu0 %v1574
  %v1576 = vpop.xlane.xlu0 %1575
  %v1577 = vsel %vm1552, %v1537, 0.0
  %1578 = vadd.xlane.f32.xlu0 %v1577
  %v1579 = vpop.xlane.xlu0 %1578
  %v1580 = vsel %vm1552, %v1539, 0.0
  %1581 = vadd.xlane.f32.xlu0 %v1580
  %v1582 = vpop.xlane.xlu0 %1581
  %v1583 = vsel %vm1552, %v1541, 0.0
  %1584 = vadd.xlane.f32.xlu0 %v1583
  %v1585 = vpop.xlane.xlu0 %1584
  %v1586 = vsel %vm1552, %v1543, 0.0
  %1587 = vadd.xlane.f32.xlu0 %v1586
  %v1588 = vpop.xlane.xlu0 %1587
  %v1589 = vsel %vm1552, %v1545, 0.0
  %1590 = vadd.xlane.f32.xlu0 %v1589
  %v1591 = vpop.xlane.xlu0 %1590
  %v1592 = vsel %vm1552, %v1547, 0.0
  %1593 = vadd.xlane.f32.xlu0 %v1592
  %v1594 = vpop.xlane.xlu0 %1593
  %v1595 = vsel %vm1552, %v1549, 0.0
  %1596 = vadd.xlane.f32.xlu0 %v1595
  %v1597 = vpop.xlane.xlu0 %1596
  %v1598 = vsel %vm1552, %v1551, 0.0
  %1599 = vadd.xlane.f32.xlu0 %v1598
  %v1600 = vpop.xlane.xlu0 %1599
  %v1601 = vrcp.pop %v1555
  %v1602 = vmul.f32 %v1521, %v1601
  %v1603 = vrcp.pop %v1558
  %v1604 = vmul.f32 %v1523, %v1603
  %v1605 = vrcp.pop %v1561
  %v1606 = vmul.f32 %v1525, %v1605
  %v1607 = vrcp.pop %v1564
  %v1608 = vmul.f32 %v1527, %v1607
  %v1609 = vrcp.pop %v1567
  %v1610 = vmul.f32 %v1529, %v1609
  %v1611 = vrcp.pop %v1570
  %v1612 = vmul.f32 %v1531, %v1611
  %v1613 = vrcp.pop %v1573
  %v1614 = vmul.f32 %v1533, %v1613
  %v1615 = vrcp.pop %v1576
  %v1616 = vmul.f32 %v1535, %v1615
  %v1617 = vrcp.pop %v1579
  %v1618 = vmul.f32 %v1537, %v1617
  %v1619 = vrcp.pop %v1582
  %v1620 = vmul.f32 %v1539, %v1619
  %v1621 = vrcp.pop %v1585
  %v1622 = vmul.f32 %v1541, %v1621
  %v1623 = vrcp.pop %v1588
  %v1624 = vmul.f32 %v1543, %v1623
  %v1625 = vrcp.pop %v1591
  %v1626 = vmul.f32 %v1545, %v1625
  %v1627 = vrcp.pop %v1594
  %v1628 = vmul.f32 %v1547, %v1627
  %v1629 = vrcp.pop %v1597
  %v1630 = vmul.f32 %v1549, %v1629
  %v1631 = vrcp.pop %v1600
  %v1632 = vmul.f32 %v1551, %v1631
  %1633 = vst.msk [vmem:[%s1] sm:$0xff] %vm1552, %v1602
  %1634 = vst.msk [vmem:[%s1 + $0x8] sm:$0xff] %vm1552, %v1604
  %1635 = vst.msk [vmem:[%s1 + $0x10] sm:$0xff] %vm1552, %v1606
  %1636 = vst.msk [vmem:[%s1 + $0x18] sm:$0xff] %vm1552, %v1608
  %1637 = vst.msk [vmem:[%s1 + $0x20] sm:$0xff] %vm1552, %v1610
  %1638 = vst.msk [vmem:[%s1 + $0x28] sm:$0xff] %vm1552, %v1612
  %1639 = vst.msk [vmem:[%s1 + $0x30] sm:$0xff] %vm1552, %v1614
  %1640 = vst.msk [vmem:[%s1 + $0x38] sm:$0xff] %vm1552, %v1616
  %1641 = vst.msk [vmem:[%s1 + $0x40] sm:$0xff] %vm1552, %v1618
  %1642 = vst.msk [vmem:[%s1 + $0x48] sm:$0xff] %vm1552, %v1620
  %1643 = vst.msk [vmem:[%s1 + $0x50] sm:$0xff] %vm1552, %v1622
  %1644 = vst.msk [vmem:[%s1 + $0x58] sm:$0xff] %vm1552, %v1624
  %1645 = vst.msk [vmem:[%s1 + $0x60] sm:$0xff] %vm1552, %v1626
  %1646 = vst.msk [vmem:[%s1 + $0x68] sm:$0xff] %vm1552, %v1628
  %1647 = vst.msk [vmem:[%s1 + $0x70] sm:$0xff] %vm1552, %v1630
  %1648 = vst.msk [vmem:[%s1 + $0x78] sm:$0xff] %vm1552, %v1632
  %1649 = vst.msk [vmem:[%s2] sm:$0xff] %vm1552, %v1488
  %1650 = vst.msk [vmem:[%s2 + $0x8] sm:$0xff] %vm1552, %v1489
  %1651 = vst.msk [vmem:[%s2 + $0x10] sm:$0xff] %vm1552, %v1490
  %1652 = vst.msk [vmem:[%s2 + $0x18] sm:$0xff] %vm1552, %v1491
  %1653 = vst.msk [vmem:[%s2 + $0x20] sm:$0xff] %vm1552, %v1492
  %1654 = vst.msk [vmem:[%s2 + $0x28] sm:$0xff] %vm1552, %v1493
  %1655 = vst.msk [vmem:[%s2 + $0x30] sm:$0xff] %vm1552, %v1494
  %1656 = vst.msk [vmem:[%s2 + $0x38] sm:$0xff] %vm1552, %v1495
  %1657 = vst.msk [vmem:[%s2 + $0x40] sm:$0xff] %vm1552, %v1496
  %1658 = vst.msk [vmem:[%s2 + $0x48] sm:$0xff] %vm1552, %v1497
  %1659 = vst.msk [vmem:[%s2 + $0x50] sm:$0xff] %vm1552, %v1498
  %1660 = vst.msk [vmem:[%s2 + $0x58] sm:$0xff] %vm1552, %v1499
  %1661 = vst.msk [vmem:[%s2 + $0x60] sm:$0xff] %vm1552, %v1500
  %1662 = vst.msk [vmem:[%s2 + $0x68] sm:$0xff] %vm1552, %v1501
  %1663 = vst.msk [vmem:[%s2 + $0x70] sm:$0xff] %vm1552, %v1502
  %1664 = vst.msk [vmem:[%s2 + $0x78] sm:$0xff] %vm1552, %v1503
  // Predicated region
  $region6: #{tpu_custom_call.1} parent=0 // pred_check
    _
  $region7: #{tpu_custom_call.1} parent=0 // pred_check_branch
    %1666 = sbr.rel (0) target = $region9
  $region8: #{tpu_custom_call.1} parent=0 // pred_region
    _
  $region9: #{tpu_custom_call.1} parent=0 // pred_fallthru
    _
  // Predicated region
  $region10: #{tpu_custom_call.1} parent=0 // pred_check
    _
  $region11: #{tpu_custom_call.1} parent=0 // pred_check_branch
    %1668 = sbr.rel (0) target = $region13
  $region12: #{tpu_custom_call.1} parent=0 // pred_region
    _
  $region13: #{tpu_custom_call.1} parent=0 // pred_fallthru
    _
  // Predicated region
  $region14: #{tpu_custom_call.1} parent=0 // pred_check
    _
  $region15: #{tpu_custom_call.1} parent=0 // pred_check_branch
    %1670 = sbr.rel (0) target = $region17
  $region16: #{tpu_custom_call.1} parent=0 // pred_region
    _
  $region17: #{tpu_custom_call.1} parent=0 // pred_fallthru
    _
  // Predicated region
  $region18: #{tpu_custom_call.1} parent=0 // pred_check
    _
  $region19: #{tpu_custom_call.1} parent=0 // pred_check_branch
    %1672 = sbr.rel (0) target = $region21
  $region20: #{tpu_custom_call.1} parent=0 // pred_region
    _
  $region21: #{tpu_custom_call.1} parent=0 // pred_fallthru
    _

</llo_original>
